<compile_context>
chip_gen: v5e
topology: v5e:2x2
jax: 0.10.0
libtpu: 0.0.40
codegen_flags: <defaults>
</compile_context>

<pallas_src>
import jax
import jax.numpy as jnp
from jax.experimental import pallas as pl
from jax.experimental.pallas import tpu as pltpu


# ----------------------------- Pallas kernel --------------------------------

def multitask_gru_kernel(gi1_ref,                 # (T_CHUNK, B, 3*H1): x@W_ih1 + b_ih1
                         whh1_ref, bhh1_ref,      # (H1, 3*H1), (1, 3*H1)
                         wih2_ref, bih2_ref,      # (H1, 3*H2), (1, 3*H2)
                         whh2_ref, bhh2_ref,      # (H2, 3*H2), (1, 3*H2)
                         h1_out_ref, h2_out_ref,  # (B, H1), (B, H2)
                         h1_ref, h2_ref):         # VMEM carries
    c = pl.program_id(0)
    t_chunk = gi1_ref.shape[0]
    B, H1 = h1_ref.shape
    H2 = h2_ref.shape[1]

    @pl.when(c == 0)
    def _():
        h1_ref[...] = jnp.zeros_like(h1_ref)
        h2_ref[...] = jnp.zeros_like(h2_ref)

    # Loop-invariant loads / broadcasts hoisted out of the unrolled time loop
    # (JAX does not CSE broadcast_in_dim).
    whh1 = whh1_ref[...]
    wih2 = wih2_ref[...]
    whh2 = whh2_ref[...]
    bhh1 = jnp.broadcast_to(bhh1_ref[...], (B, 3 * H1))
    bih2 = jnp.broadcast_to(bih2_ref[...], (B, 3 * H2))
    bhh2 = jnp.broadcast_to(bhh2_ref[...], (B, 3 * H2))

    def gru_update(gi, h, whh, bhh, H):
        # gi already holds the input projection + input bias, laid out [r|z|n].
        # One fused MXU matmul for the recurrent projection; recurrent bias
        # added once to the fused (B, 3H) pre-activation.
        gh = jnp.dot(h, whh, preferred_element_type=jnp.float32) + bhh
        r = jax.nn.sigmoid(gi[:, 0:H] + gh[:, 0:H])
        z = jax.nn.sigmoid(gi[:, H:2 * H] + gh[:, H:2 * H])
        n = jnp.tanh(gi[:, 2 * H:3 * H] + r * gh[:, 2 * H:3 * H])
        return (1.0 - z) * n + z * h

    def step(s, carry):
        h1, h2 = carry
        gi1 = gi1_ref[s]                                           # (B, 3*H1)
        h1 = gru_update(gi1, h1, whh1, bhh1, H1)
        gi2 = jnp.dot(h1, wih2, preferred_element_type=jnp.float32) + bih2
        h2 = gru_update(gi2, h2, whh2, bhh2, H2)
        return h1, h2

    h1, h2 = jax.lax.fori_loop(0, t_chunk, step,
                               (h1_ref[...], h2_ref[...]), unroll=True)

    h1_ref[...] = h1
    h2_ref[...] = h2
    # Constant-index output blocks stay resident in VMEM; the final chunk's
    # values are what gets written back to HBM.
    h1_out_ref[...] = h1
    h2_out_ref[...] = h2


# ------------------------------- wrapper -------------------------------------

def multitask_gru_forward(x, kp, t_chunk=8):
    """x: (B, T, D) float32, batch-first like the PyTorch module.

    Returns (reg_out, cls_out) matching MultitaskGRU.forward (eval mode).
    """
    B, T, D = x.shape
    H1 = kp["whh1"].shape[0]
    H2 = kp["whh2"].shape[0]

    t_chunk = min(t_chunk, T)
    assert T % t_chunk == 0, "TODO(synk): masked tail chunk for ragged T"
    n_chunks = T // t_chunk

    # Hoisted layer-1 input projection: one big MXU-friendly matmul over all T
    # timesteps, output already time-major, input bias folded in.
    gi1 = jnp.einsum("btd,dg->tbg", x, kp["wih1"]) + kp["bih1"]   # (T, B, 3*H1)

    def invariant(shape):
        n = len(shape)
        return pl.BlockSpec(shape, lambda c, _n=n: (0,) * _n)
    # NOTE: these weight/bias blocks are grid-invariant; at larger H use
    # pipeline_mode=pl.Buffered(1), bf16 weights (f32 gate math on v5e) and an
    # explicit vmem_limit_bytes budget for v7x's 64 MiB VMEM.  At these toy
    # sizes the default double-buffering costs < 100 KiB, so it is left alone.

    grid_spec = pltpu.PrefetchScalarGridSpec(
        num_scalar_prefetch=0,
        grid=(n_chunks,),
        in_specs=[
            pl.BlockSpec((t_chunk, B, 3 * H1), lambda c: (c, 0, 0)),
            invariant((H1, 3 * H1)), invariant((1, 3 * H1)),
            invariant((H1, 3 * H2)), invariant((1, 3 * H2)),
            invariant((H2, 3 * H2)), invariant((1, 3 * H2)),
        ],
        out_specs=[
            pl.BlockSpec((B, H1), lambda c: (0, 0)),
            pl.BlockSpec((B, H2), lambda c: (0, 0)),
        ],
        scratch_shapes=[pltpu.VMEM((B, H1), jnp.float32),   # h1 carry
                        pltpu.VMEM((B, H2), jnp.float32)],  # h2 carry
    )

    h1_last, h2_last = pl.pallas_call(
        multitask_gru_kernel,
        out_shape=(jax.ShapeDtypeStruct((B, H1), jnp.float32),
                   jax.ShapeDtypeStruct((B, H2), jnp.float32)),
        grid_spec=grid_spec,
        compiler_params=pltpu.CompilerParams(
            # Time-chunk axis is a sequential recurrence.
            # TODO(synk): with large B, add a leading 'parallel' batch-tile
            # grid axis to use v7x's second TensorCore.
            dimension_semantics=("arbitrary",)),
    )(gi1, kp["whh1"], kp["bhh1"],
      kp["wih2"], kp["bih2"], kp["whh2"], kp["bhh2"])

    # Tiny heads in the wrapper: XLA fuses them; keeps the kernel lean.
    cls_out = h1_last @ kp["wcls"] + kp["bcls"]                      # (B, O)
    reg_out = jnp.squeeze(h2_last @ kp["wreg"] + kp["breg"])         # .squeeze()
    return reg_out, cls_out


# ----------------------- parameter init / conversion ------------------------

def init_raw_params(key, D, H1, H2, O):
    """PyTorch-layout parameters, uniform(-1/sqrt(H), 1/sqrt(H)) like nn.GRU."""
    ks = jax.random.split(key, 12)
    k1 = float(H1) ** -0.5
    k2 = float(H2) ** -0.5

    def u(k, shape, s):
        return jax.random.uniform(k, shape, jnp.float32, -s, s)

    return dict(
        w_ih1=u(ks[0], (3 * H1, D), k1),  w_hh1=u(ks[1], (3 * H1, H1), k1),
        b_ih1=u(ks[2], (3 * H1,), k1),    b_hh1=u(ks[3], (3 * H1,), k1),
        w_ih2=u(ks[4], (3 * H2, H1), k2), w_hh2=u(ks[5], (3 * H2, H2), k2),
        b_ih2=u(ks[6], (3 * H2,), k2),    b_hh2=u(ks[7], (3 * H2,), k2),
        w_cls=u(ks[8], (O, H1), k1),      b_cls=u(ks[9], (O,), k1),
        w_reg=u(ks[10], (1, H2), k2),     b_reg=u(ks[11], (1,), k2),
    )


def to_kernel_params(raw):
    """PyTorch layout -> fused kernel layout.

    PyTorch stacks gate rows as [W_r; W_z; W_n] with shape (3H, in); the
    transpose (in, 3H) lets a single matmul produce the [r | z | n] gate
    pre-activation that the kernel slices.
    """
    return dict(
        wih1=raw["w_ih1"].T, bih1=raw["b_ih1"][None, :],
        whh1=raw["w_hh1"].T, bhh1=raw["b_hh1"][None, :],
        wih2=raw["w_ih2"].T, bih2=raw["b_ih2"][None, :],
        whh2=raw["w_hh2"].T, bhh2=raw["b_hh2"][None, :],
        wcls=raw["w_cls"].T, bcls=raw["b_cls"][None, :],
        wreg=raw["w_reg"].T, breg=raw["b_reg"][None, :],
    )


# --------------------------- pure-JAX reference ------------------------------

def _gru_layer_ref(x, w_ih, w_hh, b_ih, b_hh):
    H = w_hh.shape[1]

    def cell(h, x_t):
        gi = x_t @ w_ih.T + b_ih
        gh = h @ w_hh.T + b_hh
        i_r, i_z, i_n = jnp.split(gi, 3, axis=-1)
        h_r, h_z, h_n = jnp.split(gh, 3, axis=-1)
        r = jax.nn.sigmoid(i_r + h_r)
        z = jax.nn.sigmoid(i_z + h_z)
        n = jnp.tanh(i_n + r * h_n)
        h_new = (1.0 - z) * n + z * h
        return h_new, h_new

    h0 = jnp.zeros((x.shape[0], H), x.dtype)
    _, hs = jax.lax.scan(cell, h0, jnp.swapaxes(x, 0, 1))
    return jnp.swapaxes(hs, 0, 1)


def reference_forward(x, raw):
    out1 = _gru_layer_ref(x, raw["w_ih1"], raw["w_hh1"], raw["b_ih1"], raw["b_hh1"])
    cls_out = out1[:, -1, :] @ raw["w_cls"].T + raw["b_cls"]
    out2 = _gru_layer_ref(out1, raw["w_ih2"], raw["w_hh2"], raw["b_ih2"], raw["b_hh2"])
    reg_out = (out2[:, -1, :] @ raw["w_reg"].T + raw["b_reg"]).squeeze()
    return reg_out, cls_out


# --------------------------------- main --------------------------------------

if __name__ == "__main__":
    B, T, D = 2, 8, 4          # batch, seq, input_size
    H1, H2, O = 32, 32, 3      # hidden_size_1, hidden_size_2, output_size

    key = jax.random.PRNGKey(0)
    kx, kparam = jax.random.split(key)
    x = jax.random.normal(kx, (B, T, D), jnp.float32)

    raw = init_raw_params(kparam, D, H1, H2, O)
    kp = to_kernel_params(raw)

    fwd = jax.jit(multitask_gru_forward, static_argnames=("t_chunk",))

    # Toy T=8: one grid step, time loop fully unrolled in-kernel.
    reg_out, cls_out = fwd(x, kp)
    reg_out = jax.block_until_ready(reg_out)
    cls_out = jax.block_until_ready(cls_out)

    reg_ref, cls_ref = reference_forward(x, raw)
    assert reg_out.shape == (B,) and cls_out.shape == (B, O)
    assert jnp.allclose(reg_out, reg_ref, atol=1e-3, rtol=1e-3), (reg_out, reg_ref)
    assert jnp.allclose(cls_out, cls_ref, atol=1e-3, rtol=1e-3), (cls_out, cls_ref)

    # Also exercise the multi-chunk path (h1/h2 carry across grid steps).
    reg2, cls2 = fwd(x, kp, t_chunk=4)          # grid=(2,)
    reg2 = jax.block_until_ready(reg2)
    cls2 = jax.block_until_ready(cls2)
    assert jnp.allclose(reg2, reg_ref, atol=1e-3, rtol=1e-3), (reg2, reg_ref)
    assert jnp.allclose(cls2, cls_ref, atol=1e-3, rtol=1e-3), (cls2, cls_ref)

    print("KERNEL_OK")
</pallas_src>

<mosaic_0001>
module attributes {stable_mosaic.version = 11 : i64} {
  func.func @multitask_gru_kernel(%arg0: i32, %arg1: memref<8x2x96xf32, #tpu.memory_space<vmem>>, %arg2: memref<32x96xf32, #tpu.memory_space<vmem>>, %arg3: memref<1x96xf32, #tpu.memory_space<vmem>>, %arg4: memref<32x96xf32, #tpu.memory_space<vmem>>, %arg5: memref<1x96xf32, #tpu.memory_space<vmem>>, %arg6: memref<32x96xf32, #tpu.memory_space<vmem>>, %arg7: memref<1x96xf32, #tpu.memory_space<vmem>>, %arg8: memref<2x32xf32, #tpu.memory_space<vmem>>, %arg9: memref<2x32xf32, #tpu.memory_space<vmem>>, %arg10: memref<2x32xf32, #tpu.memory_space<vmem>>, %arg11: memref<2x32xf32, #tpu.memory_space<vmem>>) attributes {dimension_semantics = [#tpu.dimension_semantics<arbitrary>], iteration_bounds = array<i64: 1>, scalar_prefetch = 0 : i64, scratch_operands = 2 : i64, tpu.core_type = #tpu.core_type<tc>, window_params = [{transform_indices = @transform_0, window_bounds = array<i64: 8, 2, 96>}, {pipeline_mode = #tpu.pipeline_mode<synchronous>, transform_indices = @transform_1, window_bounds = array<i64: 32, 96>}, {pipeline_mode = #tpu.pipeline_mode<synchronous>, transform_indices = @transform_2, window_bounds = array<i64: 1, 96>}, {pipeline_mode = #tpu.pipeline_mode<synchronous>, transform_indices = @transform_3, window_bounds = array<i64: 32, 96>}, {pipeline_mode = #tpu.pipeline_mode<synchronous>, transform_indices = @transform_4, window_bounds = array<i64: 1, 96>}, {pipeline_mode = #tpu.pipeline_mode<synchronous>, transform_indices = @transform_5, window_bounds = array<i64: 32, 96>}, {pipeline_mode = #tpu.pipeline_mode<synchronous>, transform_indices = @transform_6, window_bounds = array<i64: 1, 96>}, {pipeline_mode = #tpu.pipeline_mode<synchronous>, transform_indices = @transform_7, window_bounds = array<i64: 2, 32>}, {pipeline_mode = #tpu.pipeline_mode<synchronous>, transform_indices = @transform_8, window_bounds = array<i64: 2, 32>}]} {
    %c0_i32 = arith.constant 0 : i32
    %0 = arith.cmpi eq, %arg0, %c0_i32 : i32
    %1 = arith.extui %0 : i1 to i32
    %c0_i32_0 = arith.constant 0 : i32
    %2 = arith.cmpi ne, %1, %c0_i32_0 : i32
    scf.if %2 {
      %cst_112 = arith.constant 0.000000e+00 : f32
      %509 = vector.broadcast %cst_112 : f32 to vector<2x32xf32>
      %c0_113 = arith.constant 0 : index
      %c0_114 = arith.constant 0 : index
      %510 = vector.load %arg10[%c0_113, %c0_114] : memref<2x32xf32, #tpu.memory_space<vmem>>, vector<2x32xf32>
      tpu.vector_store %arg10[%c0_113, %c0_114], %509 {strides = array<i32>} : memref<2x32xf32, #tpu.memory_space<vmem>>, vector<2x32xf32>,
      %cst_115 = arith.constant 0.000000e+00 : f32
      %511 = vector.broadcast %cst_115 : f32 to vector<2x32xf32>
      %c0_116 = arith.constant 0 : index
      %c0_117 = arith.constant 0 : index
      %512 = vector.load %arg11[%c0_116, %c0_117] : memref<2x32xf32, #tpu.memory_space<vmem>>, vector<2x32xf32>
      tpu.vector_store %arg11[%c0_116, %c0_117], %511 {strides = array<i32>} : memref<2x32xf32, #tpu.memory_space<vmem>>, vector<2x32xf32>,
    } else {
    }
    %c0 = arith.constant 0 : index
    %c0_1 = arith.constant 0 : index
    %3 = vector.load %arg2[%c0, %c0_1] : memref<32x96xf32, #tpu.memory_space<vmem>>, vector<32x96xf32>
    %c0_2 = arith.constant 0 : index
    %c0_3 = arith.constant 0 : index
    %4 = vector.load %arg4[%c0_2, %c0_3] : memref<32x96xf32, #tpu.memory_space<vmem>>, vector<32x96xf32>
    %c0_4 = arith.constant 0 : index
    %c0_5 = arith.constant 0 : index
    %5 = vector.load %arg6[%c0_4, %c0_5] : memref<32x96xf32, #tpu.memory_space<vmem>>, vector<32x96xf32>
    %c0_6 = arith.constant 0 : index
    %c0_7 = arith.constant 0 : index
    %6 = vector.load %arg3[%c0_6, %c0_7] : memref<1x96xf32, #tpu.memory_space<vmem>>, vector<1x96xf32>
    %7 = vector.shape_cast %6 : vector<1x96xf32> to vector<1x96xf32>
    %8 = vector.broadcast %7 : vector<1x96xf32> to vector<2x96xf32>
    %c0_8 = arith.constant 0 : index
    %c0_9 = arith.constant 0 : index
    %9 = vector.load %arg5[%c0_8, %c0_9] : memref<1x96xf32, #tpu.memory_space<vmem>>, vector<1x96xf32>
    %10 = vector.shape_cast %9 : vector<1x96xf32> to vector<1x96xf32>
    %11 = vector.broadcast %10 : vector<1x96xf32> to vector<2x96xf32>
    %c0_10 = arith.constant 0 : index
    %c0_11 = arith.constant 0 : index
    %12 = vector.load %arg7[%c0_10, %c0_11] : memref<1x96xf32, #tpu.memory_space<vmem>>, vector<1x96xf32>
    %13 = vector.shape_cast %12 : vector<1x96xf32> to vector<1x96xf32>
    %14 = vector.broadcast %13 : vector<1x96xf32> to vector<2x96xf32>
    %c0_12 = arith.constant 0 : index
    %c0_13 = arith.constant 0 : index
    %15 = vector.load %arg10[%c0_12, %c0_13] : memref<2x32xf32, #tpu.memory_space<vmem>>, vector<2x32xf32>
    %c0_14 = arith.constant 0 : index
    %c0_15 = arith.constant 0 : index
    %16 = vector.load %arg11[%c0_14, %c0_15] : memref<2x32xf32, #tpu.memory_space<vmem>>, vector<2x32xf32>
    %c0_i32_16 = arith.constant 0 : i32
    %17 = arith.index_cast %c0_i32_16 : i32 to index
    %c0_17 = arith.constant 0 : index
    %c0_18 = arith.constant 0 : index
    %18 = vector.load %arg1[%17, %c0_17, %c0_18] : memref<8x2x96xf32, #tpu.memory_space<vmem>>, vector<1x2x96xf32>
    %19 = vector.shape_cast %18 : vector<1x2x96xf32> to vector<2x96xf32>
    %cst = arith.constant dense<0.000000e+00> : vector<2x96xf32>
    %20 = tpu.matmul %15, %3, %cst {dimension_numbers = #tpu.dot_dimension_numbers<[1], [0], [0], [1], [0, 0, 1, 1], [], []>} : vector<2x32xf32>, vector<32x96xf32>, vector<2x96xf32> -> vector<2x96xf32>
    %21 = arith.addf %20, %8 : vector<2x96xf32>
    %22 = vector.extract_strided_slice %19 {offsets = [0, 0], sizes = [2, 32], strides = [1, 1]} : vector<2x96xf32> to vector<2x32xf32>
    %23 = vector.extract_strided_slice %21 {offsets = [0, 0], sizes = [2, 32], strides = [1, 1]} : vector<2x96xf32> to vector<2x32xf32>
    %24 = arith.addf %22, %23 : vector<2x32xf32>
    %25 = arith.negf %24 : vector<2x32xf32>
    %26 = math.exp %25 : vector<2x32xf32>
    %cst_19 = arith.constant 1.000000e+00 : f32
    %27 = vector.broadcast %cst_19 : f32 to vector<2x32xf32>
    %28 = arith.addf %27, %26 : vector<2x32xf32>
    %29 = arith.divf %27, %28 : vector<2x32xf32>
    %30 = vector.extract_strided_slice %19 {offsets = [0, 32], sizes = [2, 32], strides = [1, 1]} : vector<2x96xf32> to vector<2x32xf32>
    %31 = vector.extract_strided_slice %21 {offsets = [0, 32], sizes = [2, 32], strides = [1, 1]} : vector<2x96xf32> to vector<2x32xf32>
    %32 = arith.addf %30, %31 : vector<2x32xf32>
    %33 = arith.negf %32 : vector<2x32xf32>
    %34 = math.exp %33 : vector<2x32xf32>
    %cst_20 = arith.constant 1.000000e+00 : f32
    %35 = vector.broadcast %cst_20 : f32 to vector<2x32xf32>
    %36 = arith.addf %35, %34 : vector<2x32xf32>
    %37 = arith.divf %35, %36 : vector<2x32xf32>
    %38 = vector.extract_strided_slice %19 {offsets = [0, 64], sizes = [2, 32], strides = [1, 1]} : vector<2x96xf32> to vector<2x32xf32>
    %39 = vector.extract_strided_slice %21 {offsets = [0, 64], sizes = [2, 32], strides = [1, 1]} : vector<2x96xf32> to vector<2x32xf32>
    %40 = arith.mulf %29, %39 : vector<2x32xf32>
    %41 = arith.addf %38, %40 : vector<2x32xf32>
    %42 = math.tanh %41 : vector<2x32xf32>
    %cst_21 = arith.constant 1.000000e+00 : f32
    %43 = vector.broadcast %cst_21 : f32 to vector<2x32xf32>
    %44 = arith.subf %43, %37 : vector<2x32xf32>
    %45 = arith.mulf %44, %42 : vector<2x32xf32>
    %46 = arith.mulf %37, %15 : vector<2x32xf32>
    %47 = arith.addf %45, %46 : vector<2x32xf32>
    %cst_22 = arith.constant dense<0.000000e+00> : vector<2x96xf32>
    %48 = tpu.matmul %47, %4, %cst_22 {dimension_numbers = #tpu.dot_dimension_numbers<[1], [0], [0], [1], [0, 0, 1, 1], [], []>} : vector<2x32xf32>, vector<32x96xf32>, vector<2x96xf32> -> vector<2x96xf32>
    %49 = arith.addf %48, %11 : vector<2x96xf32>
    %cst_23 = arith.constant dense<0.000000e+00> : vector<2x96xf32>
    %50 = tpu.matmul %16, %5, %cst_23 {dimension_numbers = #tpu.dot_dimension_numbers<[1], [0], [0], [1], [0, 0, 1, 1], [], []>} : vector<2x32xf32>, vector<32x96xf32>, vector<2x96xf32> -> vector<2x96xf32>
    %51 = arith.addf %50, %14 : vector<2x96xf32>
    %52 = vector.extract_strided_slice %49 {offsets = [0, 0], sizes = [2, 32], strides = [1, 1]} : vector<2x96xf32> to vector<2x32xf32>
    %53 = vector.extract_strided_slice %51 {offsets = [0, 0], sizes = [2, 32], strides = [1, 1]} : vector<2x96xf32> to vector<2x32xf32>
    %54 = arith.addf %52, %53 : vector<2x32xf32>
    %55 = arith.negf %54 : vector<2x32xf32>
    %56 = math.exp %55 : vector<2x32xf32>
    %cst_24 = arith.constant 1.000000e+00 : f32
    %57 = vector.broadcast %cst_24 : f32 to vector<2x32xf32>
    %58 = arith.addf %57, %56 : vector<2x32xf32>
    %59 = arith.divf %57, %58 : vector<2x32xf32>
    %60 = vector.extract_strided_slice %49 {offsets = [0, 32], sizes = [2, 32], strides = [1, 1]} : vector<2x96xf32> to vector<2x32xf32>
    %61 = vector.extract_strided_slice %51 {offsets = [0, 32], sizes = [2, 32], strides = [1, 1]} : vector<2x96xf32> to vector<2x32xf32>
    %62 = arith.addf %60, %61 : vector<2x32xf32>
    %63 = arith.negf %62 : vector<2x32xf32>
    %64 = math.exp %63 : vector<2x32xf32>
    %cst_25 = arith.constant 1.000000e+00 : f32
    %65 = vector.broadcast %cst_25 : f32 to vector<2x32xf32>
    %66 = arith.addf %65, %64 : vector<2x32xf32>
    %67 = arith.divf %65, %66 : vector<2x32xf32>
    %68 = vector.extract_strided_slice %49 {offsets = [0, 64], sizes = [2, 32], strides = [1, 1]} : vector<2x96xf32> to vector<2x32xf32>
    %69 = vector.extract_strided_slice %51 {offsets = [0, 64], sizes = [2, 32], strides = [1, 1]} : vector<2x96xf32> to vector<2x32xf32>
    %70 = arith.mulf %59, %69 : vector<2x32xf32>
    %71 = arith.addf %68, %70 : vector<2x32xf32>
    %72 = math.tanh %71 : vector<2x32xf32>
    %cst_26 = arith.constant 1.000000e+00 : f32
    %73 = vector.broadcast %cst_26 : f32 to vector<2x32xf32>
    %74 = arith.subf %73, %67 : vector<2x32xf32>
    %75 = arith.mulf %74, %72 : vector<2x32xf32>
    %76 = arith.mulf %67, %16 : vector<2x32xf32>
    %77 = arith.addf %75, %76 : vector<2x32xf32>
    %c1_i32 = arith.constant 1 : i32
    %78 = arith.index_cast %c1_i32 : i32 to index
    %c0_27 = arith.constant 0 : index
    %c0_28 = arith.constant 0 : index
    %79 = vector.load %arg1[%78, %c0_27, %c0_28] : memref<8x2x96xf32, #tpu.memory_space<vmem>>, vector<1x2x96xf32>
    %80 = vector.shape_cast %79 : vector<1x2x96xf32> to vector<2x96xf32>
    %cst_29 = arith.constant dense<0.000000e+00> : vector<2x96xf32>
    %81 = tpu.matmul %47, %3, %cst_29 {dimension_numbers = #tpu.dot_dimension_numbers<[1], [0], [0], [1], [0, 0, 1, 1], [], []>} : vector<2x32xf32>, vector<32x96xf32>, vector<2x96xf32> -> vector<2x96xf32>
    %82 = arith.addf %81, %8 : vector<2x96xf32>
    %83 = vector.extract_strided_slice %80 {offsets = [0, 0], sizes = [2, 32], strides = [1, 1]} : vector<2x96xf32> to vector<2x32xf32>
    %84 = vector.extract_strided_slice %82 {offsets = [0, 0], sizes = [2, 32], strides = [1, 1]} : vector<2x96xf32> to vector<2x32xf32>
    %85 = arith.addf %83, %84 : vector<2x32xf32>
    %86 = arith.negf %85 : vector<2x32xf32>
    %87 = math.exp %86 : vector<2x32xf32>
    %cst_30 = arith.constant 1.000000e+00 : f32
    %88 = vector.broadcast %cst_30 : f32 to vector<2x32xf32>
    %89 = arith.addf %88, %87 : vector<2x32xf32>
    %90 = arith.divf %88, %89 : vector<2x32xf32>
    %91 = vector.extract_strided_slice %80 {offsets = [0, 32], sizes = [2, 32], strides = [1, 1]} : vector<2x96xf32> to vector<2x32xf32>
    %92 = vector.extract_strided_slice %82 {offsets = [0, 32], sizes = [2, 32], strides = [1, 1]} : vector<2x96xf32> to vector<2x32xf32>
    %93 = arith.addf %91, %92 : vector<2x32xf32>
    %94 = arith.negf %93 : vector<2x32xf32>
    %95 = math.exp %94 : vector<2x32xf32>
    %cst_31 = arith.constant 1.000000e+00 : f32
    %96 = vector.broadcast %cst_31 : f32 to vector<2x32xf32>
    %97 = arith.addf %96, %95 : vector<2x32xf32>
    %98 = arith.divf %96, %97 : vector<2x32xf32>
    %99 = vector.extract_strided_slice %80 {offsets = [0, 64], sizes = [2, 32], strides = [1, 1]} : vector<2x96xf32> to vector<2x32xf32>
    %100 = vector.extract_strided_slice %82 {offsets = [0, 64], sizes = [2, 32], strides = [1, 1]} : vector<2x96xf32> to vector<2x32xf32>
    %101 = arith.mulf %90, %100 : vector<2x32xf32>
    %102 = arith.addf %99, %101 : vector<2x32xf32>
    %103 = math.tanh %102 : vector<2x32xf32>
    %cst_32 = arith.constant 1.000000e+00 : f32
    %104 = vector.broadcast %cst_32 : f32 to vector<2x32xf32>
    %105 = arith.subf %104, %98 : vector<2x32xf32>
    %106 = arith.mulf %105, %103 : vector<2x32xf32>
    %107 = arith.mulf %98, %47 : vector<2x32xf32>
    %108 = arith.addf %106, %107 : vector<2x32xf32>
    %cst_33 = arith.constant dense<0.000000e+00> : vector<2x96xf32>
    %109 = tpu.matmul %108, %4, %cst_33 {dimension_numbers = #tpu.dot_dimension_numbers<[1], [0], [0], [1], [0, 0, 1, 1], [], []>} : vector<2x32xf32>, vector<32x96xf32>, vector<2x96xf32> -> vector<2x96xf32>
    %110 = arith.addf %109, %11 : vector<2x96xf32>
    %cst_34 = arith.constant dense<0.000000e+00> : vector<2x96xf32>
    %111 = tpu.matmul %77, %5, %cst_34 {dimension_numbers = #tpu.dot_dimension_numbers<[1], [0], [0], [1], [0, 0, 1, 1], [], []>} : vector<2x32xf32>, vector<32x96xf32>, vector<2x96xf32> -> vector<2x96xf32>
    %112 = arith.addf %111, %14 : vector<2x96xf32>
    %113 = vector.extract_strided_slice %110 {offsets = [0, 0], sizes = [2, 32], strides = [1, 1]} : vector<2x96xf32> to vector<2x32xf32>
    %114 = vector.extract_strided_slice %112 {offsets = [0, 0], sizes = [2, 32], strides = [1, 1]} : vector<2x96xf32> to vector<2x32xf32>
    %115 = arith.addf %113, %114 : vector<2x32xf32>
    %116 = arith.negf %115 : vector<2x32xf32>
    %117 = math.exp %116 : vector<2x32xf32>
    %cst_35 = arith.constant 1.000000e+00 : f32
    %118 = vector.broadcast %cst_35 : f32 to vector<2x32xf32>
    %119 = arith.addf %118, %117 : vector<2x32xf32>
    %120 = arith.divf %118, %119 : vector<2x32xf32>
    %121 = vector.extract_strided_slice %110 {offsets = [0, 32], sizes = [2, 32], strides = [1, 1]} : vector<2x96xf32> to vector<2x32xf32>
    %122 = vector.extract_strided_slice %112 {offsets = [0, 32], sizes = [2, 32], strides = [1, 1]} : vector<2x96xf32> to vector<2x32xf32>
    %123 = arith.addf %121, %122 : vector<2x32xf32>
    %124 = arith.negf %123 : vector<2x32xf32>
    %125 = math.exp %124 : vector<2x32xf32>
    %cst_36 = arith.constant 1.000000e+00 : f32
    %126 = vector.broadcast %cst_36 : f32 to vector<2x32xf32>
    %127 = arith.addf %126, %125 : vector<2x32xf32>
    %128 = arith.divf %126, %127 : vector<2x32xf32>
    %129 = vector.extract_strided_slice %110 {offsets = [0, 64], sizes = [2, 32], strides = [1, 1]} : vector<2x96xf32> to vector<2x32xf32>
    %130 = vector.extract_strided_slice %112 {offsets = [0, 64], sizes = [2, 32], strides = [1, 1]} : vector<2x96xf32> to vector<2x32xf32>
    %131 = arith.mulf %120, %130 : vector<2x32xf32>
    %132 = arith.addf %129, %131 : vector<2x32xf32>
    %133 = math.tanh %132 : vector<2x32xf32>
    %cst_37 = arith.constant 1.000000e+00 : f32
    %134 = vector.broadcast %cst_37 : f32 to vector<2x32xf32>
    %135 = arith.subf %134, %128 : vector<2x32xf32>
    %136 = arith.mulf %135, %133 : vector<2x32xf32>
    %137 = arith.mulf %128, %77 : vector<2x32xf32>
    %138 = arith.addf %136, %137 : vector<2x32xf32>
    %c2_i32 = arith.constant 2 : i32
    %139 = arith.index_cast %c2_i32 : i32 to index
    %c0_38 = arith.constant 0 : index
    %c0_39 = arith.constant 0 : index
    %140 = vector.load %arg1[%139, %c0_38, %c0_39] : memref<8x2x96xf32, #tpu.memory_space<vmem>>, vector<1x2x96xf32>
    %141 = vector.shape_cast %140 : vector<1x2x96xf32> to vector<2x96xf32>
    %cst_40 = arith.constant dense<0.000000e+00> : vector<2x96xf32>
    %142 = tpu.matmul %108, %3, %cst_40 {dimension_numbers = #tpu.dot_dimension_numbers<[1], [0], [0], [1], [0, 0, 1, 1], [], []>} : vector<2x32xf32>, vector<32x96xf32>, vector<2x96xf32> -> vector<2x96xf32>
    %143 = arith.addf %142, %8 : vector<2x96xf32>
    %144 = vector.extract_strided_slice %141 {offsets = [0, 0], sizes = [2, 32], strides = [1, 1]} : vector<2x96xf32> to vector<2x32xf32>
    %145 = vector.extract_strided_slice %143 {offsets = [0, 0], sizes = [2, 32], strides = [1, 1]} : vector<2x96xf32> to vector<2x32xf32>
    %146 = arith.addf %144, %145 : vector<2x32xf32>
    %147 = arith.negf %146 : vector<2x32xf32>
    %148 = math.exp %147 : vector<2x32xf32>
    %cst_41 = arith.constant 1.000000e+00 : f32
    %149 = vector.broadcast %cst_41 : f32 to vector<2x32xf32>
    %150 = arith.addf %149, %148 : vector<2x32xf32>
    %151 = arith.divf %149, %150 : vector<2x32xf32>
    %152 = vector.extract_strided_slice %141 {offsets = [0, 32], sizes = [2, 32], strides = [1, 1]} : vector<2x96xf32> to vector<2x32xf32>
    %153 = vector.extract_strided_slice %143 {offsets = [0, 32], sizes = [2, 32], strides = [1, 1]} : vector<2x96xf32> to vector<2x32xf32>
    %154 = arith.addf %152, %153 : vector<2x32xf32>
    %155 = arith.negf %154 : vector<2x32xf32>
    %156 = math.exp %155 : vector<2x32xf32>
    %cst_42 = arith.constant 1.000000e+00 : f32
    %157 = vector.broadcast %cst_42 : f32 to vector<2x32xf32>
    %158 = arith.addf %157, %156 : vector<2x32xf32>
    %159 = arith.divf %157, %158 : vector<2x32xf32>
    %160 = vector.extract_strided_slice %141 {offsets = [0, 64], sizes = [2, 32], strides = [1, 1]} : vector<2x96xf32> to vector<2x32xf32>
    %161 = vector.extract_strided_slice %143 {offsets = [0, 64], sizes = [2, 32], strides = [1, 1]} : vector<2x96xf32> to vector<2x32xf32>
    %162 = arith.mulf %151, %161 : vector<2x32xf32>
    %163 = arith.addf %160, %162 : vector<2x32xf32>
    %164 = math.tanh %163 : vector<2x32xf32>
    %cst_43 = arith.constant 1.000000e+00 : f32
    %165 = vector.broadcast %cst_43 : f32 to vector<2x32xf32>
    %166 = arith.subf %165, %159 : vector<2x32xf32>
    %167 = arith.mulf %166, %164 : vector<2x32xf32>
    %168 = arith.mulf %159, %108 : vector<2x32xf32>
    %169 = arith.addf %167, %168 : vector<2x32xf32>
    %cst_44 = arith.constant dense<0.000000e+00> : vector<2x96xf32>
    %170 = tpu.matmul %169, %4, %cst_44 {dimension_numbers = #tpu.dot_dimension_numbers<[1], [0], [0], [1], [0, 0, 1, 1], [], []>} : vector<2x32xf32>, vector<32x96xf32>, vector<2x96xf32> -> vector<2x96xf32>
    %171 = arith.addf %170, %11 : vector<2x96xf32>
    %cst_45 = arith.constant dense<0.000000e+00> : vector<2x96xf32>
    %172 = tpu.matmul %138, %5, %cst_45 {dimension_numbers = #tpu.dot_dimension_numbers<[1], [0], [0], [1], [0, 0, 1, 1], [], []>} : vector<2x32xf32>, vector<32x96xf32>, vector<2x96xf32> -> vector<2x96xf32>
    %173 = arith.addf %172, %14 : vector<2x96xf32>
    %174 = vector.extract_strided_slice %171 {offsets = [0, 0], sizes = [2, 32], strides = [1, 1]} : vector<2x96xf32> to vector<2x32xf32>
    %175 = vector.extract_strided_slice %173 {offsets = [0, 0], sizes = [2, 32], strides = [1, 1]} : vector<2x96xf32> to vector<2x32xf32>
    %176 = arith.addf %174, %175 : vector<2x32xf32>
    %177 = arith.negf %176 : vector<2x32xf32>
    %178 = math.exp %177 : vector<2x32xf32>
    %cst_46 = arith.constant 1.000000e+00 : f32
    %179 = vector.broadcast %cst_46 : f32 to vector<2x32xf32>
    %180 = arith.addf %179, %178 : vector<2x32xf32>
    %181 = arith.divf %179, %180 : vector<2x32xf32>
    %182 = vector.extract_strided_slice %171 {offsets = [0, 32], sizes = [2, 32], strides = [1, 1]} : vector<2x96xf32> to vector<2x32xf32>
    %183 = vector.extract_strided_slice %173 {offsets = [0, 32], sizes = [2, 32], strides = [1, 1]} : vector<2x96xf32> to vector<2x32xf32>
    %184 = arith.addf %182, %183 : vector<2x32xf32>
    %185 = arith.negf %184 : vector<2x32xf32>
    %186 = math.exp %185 : vector<2x32xf32>
    %cst_47 = arith.constant 1.000000e+00 : f32
    %187 = vector.broadcast %cst_47 : f32 to vector<2x32xf32>
    %188 = arith.addf %187, %186 : vector<2x32xf32>
    %189 = arith.divf %187, %188 : vector<2x32xf32>
    %190 = vector.extract_strided_slice %171 {offsets = [0, 64], sizes = [2, 32], strides = [1, 1]} : vector<2x96xf32> to vector<2x32xf32>
    %191 = vector.extract_strided_slice %173 {offsets = [0, 64], sizes = [2, 32], strides = [1, 1]} : vector<2x96xf32> to vector<2x32xf32>
    %192 = arith.mulf %181, %191 : vector<2x32xf32>
    %193 = arith.addf %190, %192 : vector<2x32xf32>
    %194 = math.tanh %193 : vector<2x32xf32>
    %cst_48 = arith.constant 1.000000e+00 : f32
    %195 = vector.broadcast %cst_48 : f32 to vector<2x32xf32>
    %196 = arith.subf %195, %189 : vector<2x32xf32>
    %197 = arith.mulf %196, %194 : vector<2x32xf32>
    %198 = arith.mulf %189, %138 : vector<2x32xf32>
    %199 = arith.addf %197, %198 : vector<2x32xf32>
    %c3_i32 = arith.constant 3 : i32
    %200 = arith.index_cast %c3_i32 : i32 to index
    %c0_49 = arith.constant 0 : index
    %c0_50 = arith.constant 0 : index
    %201 = vector.load %arg1[%200, %c0_49, %c0_50] : memref<8x2x96xf32, #tpu.memory_space<vmem>>, vector<1x2x96xf32>
    %202 = vector.shape_cast %201 : vector<1x2x96xf32> to vector<2x96xf32>
    %cst_51 = arith.constant dense<0.000000e+00> : vector<2x96xf32>
    %203 = tpu.matmul %169, %3, %cst_51 {dimension_numbers = #tpu.dot_dimension_numbers<[1], [0], [0], [1], [0, 0, 1, 1], [], []>} : vector<2x32xf32>, vector<32x96xf32>, vector<2x96xf32> -> vector<2x96xf32>
    %204 = arith.addf %203, %8 : vector<2x96xf32>
    %205 = vector.extract_strided_slice %202 {offsets = [0, 0], sizes = [2, 32], strides = [1, 1]} : vector<2x96xf32> to vector<2x32xf32>
    %206 = vector.extract_strided_slice %204 {offsets = [0, 0], sizes = [2, 32], strides = [1, 1]} : vector<2x96xf32> to vector<2x32xf32>
    %207 = arith.addf %205, %206 : vector<2x32xf32>
    %208 = arith.negf %207 : vector<2x32xf32>
    %209 = math.exp %208 : vector<2x32xf32>
    %cst_52 = arith.constant 1.000000e+00 : f32
    %210 = vector.broadcast %cst_52 : f32 to vector<2x32xf32>
    %211 = arith.addf %210, %209 : vector<2x32xf32>
    %212 = arith.divf %210, %211 : vector<2x32xf32>
    %213 = vector.extract_strided_slice %202 {offsets = [0, 32], sizes = [2, 32], strides = [1, 1]} : vector<2x96xf32> to vector<2x32xf32>
    %214 = vector.extract_strided_slice %204 {offsets = [0, 32], sizes = [2, 32], strides = [1, 1]} : vector<2x96xf32> to vector<2x32xf32>
    %215 = arith.addf %213, %214 : vector<2x32xf32>
    %216 = arith.negf %215 : vector<2x32xf32>
    %217 = math.exp %216 : vector<2x32xf32>
    %cst_53 = arith.constant 1.000000e+00 : f32
    %218 = vector.broadcast %cst_53 : f32 to vector<2x32xf32>
    %219 = arith.addf %218, %217 : vector<2x32xf32>
    %220 = arith.divf %218, %219 : vector<2x32xf32>
    %221 = vector.extract_strided_slice %202 {offsets = [0, 64], sizes = [2, 32], strides = [1, 1]} : vector<2x96xf32> to vector<2x32xf32>
    %222 = vector.extract_strided_slice %204 {offsets = [0, 64], sizes = [2, 32], strides = [1, 1]} : vector<2x96xf32> to vector<2x32xf32>
    %223 = arith.mulf %212, %222 : vector<2x32xf32>
    %224 = arith.addf %221, %223 : vector<2x32xf32>
    %225 = math.tanh %224 : vector<2x32xf32>
    %cst_54 = arith.constant 1.000000e+00 : f32
    %226 = vector.broadcast %cst_54 : f32 to vector<2x32xf32>
    %227 = arith.subf %226, %220 : vector<2x32xf32>
    %228 = arith.mulf %227, %225 : vector<2x32xf32>
    %229 = arith.mulf %220, %169 : vector<2x32xf32>
    %230 = arith.addf %228, %229 : vector<2x32xf32>
    %cst_55 = arith.constant dense<0.000000e+00> : vector<2x96xf32>
    %231 = tpu.matmul %230, %4, %cst_55 {dimension_numbers = #tpu.dot_dimension_numbers<[1], [0], [0], [1], [0, 0, 1, 1], [], []>} : vector<2x32xf32>, vector<32x96xf32>, vector<2x96xf32> -> vector<2x96xf32>
    %232 = arith.addf %231, %11 : vector<2x96xf32>
    %cst_56 = arith.constant dense<0.000000e+00> : vector<2x96xf32>
    %233 = tpu.matmul %199, %5, %cst_56 {dimension_numbers = #tpu.dot_dimension_numbers<[1], [0], [0], [1], [0, 0, 1, 1], [], []>} : vector<2x32xf32>, vector<32x96xf32>, vector<2x96xf32> -> vector<2x96xf32>
    %234 = arith.addf %233, %14 : vector<2x96xf32>
    %235 = vector.extract_strided_slice %232 {offsets = [0, 0], sizes = [2, 32], strides = [1, 1]} : vector<2x96xf32> to vector<2x32xf32>
    %236 = vector.extract_strided_slice %234 {offsets = [0, 0], sizes = [2, 32], strides = [1, 1]} : vector<2x96xf32> to vector<2x32xf32>
    %237 = arith.addf %235, %236 : vector<2x32xf32>
    %238 = arith.negf %237 : vector<2x32xf32>
    %239 = math.exp %238 : vector<2x32xf32>
    %cst_57 = arith.constant 1.000000e+00 : f32
    %240 = vector.broadcast %cst_57 : f32 to vector<2x32xf32>
    %241 = arith.addf %240, %239 : vector<2x32xf32>
    %242 = arith.divf %240, %241 : vector<2x32xf32>
    %243 = vector.extract_strided_slice %232 {offsets = [0, 32], sizes = [2, 32], strides = [1, 1]} : vector<2x96xf32> to vector<2x32xf32>
    %244 = vector.extract_strided_slice %234 {offsets = [0, 32], sizes = [2, 32], strides = [1, 1]} : vector<2x96xf32> to vector<2x32xf32>
    %245 = arith.addf %243, %244 : vector<2x32xf32>
    %246 = arith.negf %245 : vector<2x32xf32>
    %247 = math.exp %246 : vector<2x32xf32>
    %cst_58 = arith.constant 1.000000e+00 : f32
    %248 = vector.broadcast %cst_58 : f32 to vector<2x32xf32>
    %249 = arith.addf %248, %247 : vector<2x32xf32>
    %250 = arith.divf %248, %249 : vector<2x32xf32>
    %251 = vector.extract_strided_slice %232 {offsets = [0, 64], sizes = [2, 32], strides = [1, 1]} : vector<2x96xf32> to vector<2x32xf32>
    %252 = vector.extract_strided_slice %234 {offsets = [0, 64], sizes = [2, 32], strides = [1, 1]} : vector<2x96xf32> to vector<2x32xf32>
    %253 = arith.mulf %242, %252 : vector<2x32xf32>
    %254 = arith.addf %251, %253 : vector<2x32xf32>
    %255 = math.tanh %254 : vector<2x32xf32>
    %cst_59 = arith.constant 1.000000e+00 : f32
    %256 = vector.broadcast %cst_59 : f32 to vector<2x32xf32>
    %257 = arith.subf %256, %250 : vector<2x32xf32>
    %258 = arith.mulf %257, %255 : vector<2x32xf32>
    %259 = arith.mulf %250, %199 : vector<2x32xf32>
    %260 = arith.addf %258, %259 : vector<2x32xf32>
    %c4_i32 = arith.constant 4 : i32
    %261 = arith.index_cast %c4_i32 : i32 to index
    %c0_60 = arith.constant 0 : index
    %c0_61 = arith.constant 0 : index
    %262 = vector.load %arg1[%261, %c0_60, %c0_61] : memref<8x2x96xf32, #tpu.memory_space<vmem>>, vector<1x2x96xf32>
    %263 = vector.shape_cast %262 : vector<1x2x96xf32> to vector<2x96xf32>
    %cst_62 = arith.constant dense<0.000000e+00> : vector<2x96xf32>
    %264 = tpu.matmul %230, %3, %cst_62 {dimension_numbers = #tpu.dot_dimension_numbers<[1], [0], [0], [1], [0, 0, 1, 1], [], []>} : vector<2x32xf32>, vector<32x96xf32>, vector<2x96xf32> -> vector<2x96xf32>
    %265 = arith.addf %264, %8 : vector<2x96xf32>
    %266 = vector.extract_strided_slice %263 {offsets = [0, 0], sizes = [2, 32], strides = [1, 1]} : vector<2x96xf32> to vector<2x32xf32>
    %267 = vector.extract_strided_slice %265 {offsets = [0, 0], sizes = [2, 32], strides = [1, 1]} : vector<2x96xf32> to vector<2x32xf32>
    %268 = arith.addf %266, %267 : vector<2x32xf32>
    %269 = arith.negf %268 : vector<2x32xf32>
    %270 = math.exp %269 : vector<2x32xf32>
    %cst_63 = arith.constant 1.000000e+00 : f32
    %271 = vector.broadcast %cst_63 : f32 to vector<2x32xf32>
    %272 = arith.addf %271, %270 : vector<2x32xf32>
    %273 = arith.divf %271, %272 : vector<2x32xf32>
    %274 = vector.extract_strided_slice %263 {offsets = [0, 32], sizes = [2, 32], strides = [1, 1]} : vector<2x96xf32> to vector<2x32xf32>
    %275 = vector.extract_strided_slice %265 {offsets = [0, 32], sizes = [2, 32], strides = [1, 1]} : vector<2x96xf32> to vector<2x32xf32>
    %276 = arith.addf %274, %275 : vector<2x32xf32>
    %277 = arith.negf %276 : vector<2x32xf32>
    %278 = math.exp %277 : vector<2x32xf32>
    %cst_64 = arith.constant 1.000000e+00 : f32
    %279 = vector.broadcast %cst_64 : f32 to vector<2x32xf32>
    %280 = arith.addf %279, %278 : vector<2x32xf32>
    %281 = arith.divf %279, %280 : vector<2x32xf32>
    %282 = vector.extract_strided_slice %263 {offsets = [0, 64], sizes = [2, 32], strides = [1, 1]} : vector<2x96xf32> to vector<2x32xf32>
    %283 = vector.extract_strided_slice %265 {offsets = [0, 64], sizes = [2, 32], strides = [1, 1]} : vector<2x96xf32> to vector<2x32xf32>
    %284 = arith.mulf %273, %283 : vector<2x32xf32>
    %285 = arith.addf %282, %284 : vector<2x32xf32>
    %286 = math.tanh %285 : vector<2x32xf32>
    %cst_65 = arith.constant 1.000000e+00 : f32
    %287 = vector.broadcast %cst_65 : f32 to vector<2x32xf32>
    %288 = arith.subf %287, %281 : vector<2x32xf32>
    %289 = arith.mulf %288, %286 : vector<2x32xf32>
    %290 = arith.mulf %281, %230 : vector<2x32xf32>
    %291 = arith.addf %289, %290 : vector<2x32xf32>
    %cst_66 = arith.constant dense<0.000000e+00> : vector<2x96xf32>
    %292 = tpu.matmul %291, %4, %cst_66 {dimension_numbers = #tpu.dot_dimension_numbers<[1], [0], [0], [1], [0, 0, 1, 1], [], []>} : vector<2x32xf32>, vector<32x96xf32>, vector<2x96xf32> -> vector<2x96xf32>
    %293 = arith.addf %292, %11 : vector<2x96xf32>
    %cst_67 = arith.constant dense<0.000000e+00> : vector<2x96xf32>
    %294 = tpu.matmul %260, %5, %cst_67 {dimension_numbers = #tpu.dot_dimension_numbers<[1], [0], [0], [1], [0, 0, 1, 1], [], []>} : vector<2x32xf32>, vector<32x96xf32>, vector<2x96xf32> -> vector<2x96xf32>
    %295 = arith.addf %294, %14 : vector<2x96xf32>
    %296 = vector.extract_strided_slice %293 {offsets = [0, 0], sizes = [2, 32], strides = [1, 1]} : vector<2x96xf32> to vector<2x32xf32>
    %297 = vector.extract_strided_slice %295 {offsets = [0, 0], sizes = [2, 32], strides = [1, 1]} : vector<2x96xf32> to vector<2x32xf32>
    %298 = arith.addf %296, %297 : vector<2x32xf32>
    %299 = arith.negf %298 : vector<2x32xf32>
    %300 = math.exp %299 : vector<2x32xf32>
    %cst_68 = arith.constant 1.000000e+00 : f32
    %301 = vector.broadcast %cst_68 : f32 to vector<2x32xf32>
    %302 = arith.addf %301, %300 : vector<2x32xf32>
    %303 = arith.divf %301, %302 : vector<2x32xf32>
    %304 = vector.extract_strided_slice %293 {offsets = [0, 32], sizes = [2, 32], strides = [1, 1]} : vector<2x96xf32> to vector<2x32xf32>
    %305 = vector.extract_strided_slice %295 {offsets = [0, 32], sizes = [2, 32], strides = [1, 1]} : vector<2x96xf32> to vector<2x32xf32>
    %306 = arith.addf %304, %305 : vector<2x32xf32>
    %307 = arith.negf %306 : vector<2x32xf32>
    %308 = math.exp %307 : vector<2x32xf32>
    %cst_69 = arith.constant 1.000000e+00 : f32
    %309 = vector.broadcast %cst_69 : f32 to vector<2x32xf32>
    %310 = arith.addf %309, %308 : vector<2x32xf32>
    %311 = arith.divf %309, %310 : vector<2x32xf32>
    %312 = vector.extract_strided_slice %293 {offsets = [0, 64], sizes = [2, 32], strides = [1, 1]} : vector<2x96xf32> to vector<2x32xf32>
    %313 = vector.extract_strided_slice %295 {offsets = [0, 64], sizes = [2, 32], strides = [1, 1]} : vector<2x96xf32> to vector<2x32xf32>
    %314 = arith.mulf %303, %313 : vector<2x32xf32>
    %315 = arith.addf %312, %314 : vector<2x32xf32>
    %316 = math.tanh %315 : vector<2x32xf32>
    %cst_70 = arith.constant 1.000000e+00 : f32
    %317 = vector.broadcast %cst_70 : f32 to vector<2x32xf32>
    %318 = arith.subf %317, %311 : vector<2x32xf32>
    %319 = arith.mulf %318, %316 : vector<2x32xf32>
    %320 = arith.mulf %311, %260 : vector<2x32xf32>
    %321 = arith.addf %319, %320 : vector<2x32xf32>
    %c5_i32 = arith.constant 5 : i32
    %322 = arith.index_cast %c5_i32 : i32 to index
    %c0_71 = arith.constant 0 : index
    %c0_72 = arith.constant 0 : index
    %323 = vector.load %arg1[%322, %c0_71, %c0_72] : memref<8x2x96xf32, #tpu.memory_space<vmem>>, vector<1x2x96xf32>
    %324 = vector.shape_cast %323 : vector<1x2x96xf32> to vector<2x96xf32>
    %cst_73 = arith.constant dense<0.000000e+00> : vector<2x96xf32>
    %325 = tpu.matmul %291, %3, %cst_73 {dimension_numbers = #tpu.dot_dimension_numbers<[1], [0], [0], [1], [0, 0, 1, 1], [], []>} : vector<2x32xf32>, vector<32x96xf32>, vector<2x96xf32> -> vector<2x96xf32>
    %326 = arith.addf %325, %8 : vector<2x96xf32>
    %327 = vector.extract_strided_slice %324 {offsets = [0, 0], sizes = [2, 32], strides = [1, 1]} : vector<2x96xf32> to vector<2x32xf32>
    %328 = vector.extract_strided_slice %326 {offsets = [0, 0], sizes = [2, 32], strides = [1, 1]} : vector<2x96xf32> to vector<2x32xf32>
    %329 = arith.addf %327, %328 : vector<2x32xf32>
    %330 = arith.negf %329 : vector<2x32xf32>
    %331 = math.exp %330 : vector<2x32xf32>
    %cst_74 = arith.constant 1.000000e+00 : f32
    %332 = vector.broadcast %cst_74 : f32 to vector<2x32xf32>
    %333 = arith.addf %332, %331 : vector<2x32xf32>
    %334 = arith.divf %332, %333 : vector<2x32xf32>
    %335 = vector.extract_strided_slice %324 {offsets = [0, 32], sizes = [2, 32], strides = [1, 1]} : vector<2x96xf32> to vector<2x32xf32>
    %336 = vector.extract_strided_slice %326 {offsets = [0, 32], sizes = [2, 32], strides = [1, 1]} : vector<2x96xf32> to vector<2x32xf32>
    %337 = arith.addf %335, %336 : vector<2x32xf32>
    %338 = arith.negf %337 : vector<2x32xf32>
    %339 = math.exp %338 : vector<2x32xf32>
    %cst_75 = arith.constant 1.000000e+00 : f32
    %340 = vector.broadcast %cst_75 : f32 to vector<2x32xf32>
    %341 = arith.addf %340, %339 : vector<2x32xf32>
    %342 = arith.divf %340, %341 : vector<2x32xf32>
    %343 = vector.extract_strided_slice %324 {offsets = [0, 64], sizes = [2, 32], strides = [1, 1]} : vector<2x96xf32> to vector<2x32xf32>
    %344 = vector.extract_strided_slice %326 {offsets = [0, 64], sizes = [2, 32], strides = [1, 1]} : vector<2x96xf32> to vector<2x32xf32>
    %345 = arith.mulf %334, %344 : vector<2x32xf32>
    %346 = arith.addf %343, %345 : vector<2x32xf32>
    %347 = math.tanh %346 : vector<2x32xf32>
    %cst_76 = arith.constant 1.000000e+00 : f32
    %348 = vector.broadcast %cst_76 : f32 to vector<2x32xf32>
    %349 = arith.subf %348, %342 : vector<2x32xf32>
    %350 = arith.mulf %349, %347 : vector<2x32xf32>
    %351 = arith.mulf %342, %291 : vector<2x32xf32>
    %352 = arith.addf %350, %351 : vector<2x32xf32>
    %cst_77 = arith.constant dense<0.000000e+00> : vector<2x96xf32>
    %353 = tpu.matmul %352, %4, %cst_77 {dimension_numbers = #tpu.dot_dimension_numbers<[1], [0], [0], [1], [0, 0, 1, 1], [], []>} : vector<2x32xf32>, vector<32x96xf32>, vector<2x96xf32> -> vector<2x96xf32>
    %354 = arith.addf %353, %11 : vector<2x96xf32>
    %cst_78 = arith.constant dense<0.000000e+00> : vector<2x96xf32>
    %355 = tpu.matmul %321, %5, %cst_78 {dimension_numbers = #tpu.dot_dimension_numbers<[1], [0], [0], [1], [0, 0, 1, 1], [], []>} : vector<2x32xf32>, vector<32x96xf32>, vector<2x96xf32> -> vector<2x96xf32>
    %356 = arith.addf %355, %14 : vector<2x96xf32>
    %357 = vector.extract_strided_slice %354 {offsets = [0, 0], sizes = [2, 32], strides = [1, 1]} : vector<2x96xf32> to vector<2x32xf32>
    %358 = vector.extract_strided_slice %356 {offsets = [0, 0], sizes = [2, 32], strides = [1, 1]} : vector<2x96xf32> to vector<2x32xf32>
    %359 = arith.addf %357, %358 : vector<2x32xf32>
    %360 = arith.negf %359 : vector<2x32xf32>
    %361 = math.exp %360 : vector<2x32xf32>
    %cst_79 = arith.constant 1.000000e+00 : f32
    %362 = vector.broadcast %cst_79 : f32 to vector<2x32xf32>
    %363 = arith.addf %362, %361 : vector<2x32xf32>
    %364 = arith.divf %362, %363 : vector<2x32xf32>
    %365 = vector.extract_strided_slice %354 {offsets = [0, 32], sizes = [2, 32], strides = [1, 1]} : vector<2x96xf32> to vector<2x32xf32>
    %366 = vector.extract_strided_slice %356 {offsets = [0, 32], sizes = [2, 32], strides = [1, 1]} : vector<2x96xf32> to vector<2x32xf32>
    %367 = arith.addf %365, %366 : vector<2x32xf32>
    %368 = arith.negf %367 : vector<2x32xf32>
    %369 = math.exp %368 : vector<2x32xf32>
    %cst_80 = arith.constant 1.000000e+00 : f32
    %370 = vector.broadcast %cst_80 : f32 to vector<2x32xf32>
    %371 = arith.addf %370, %369 : vector<2x32xf32>
    %372 = arith.divf %370, %371 : vector<2x32xf32>
    %373 = vector.extract_strided_slice %354 {offsets = [0, 64], sizes = [2, 32], strides = [1, 1]} : vector<2x96xf32> to vector<2x32xf32>
    %374 = vector.extract_strided_slice %356 {offsets = [0, 64], sizes = [2, 32], strides = [1, 1]} : vector<2x96xf32> to vector<2x32xf32>
    %375 = arith.mulf %364, %374 : vector<2x32xf32>
    %376 = arith.addf %373, %375 : vector<2x32xf32>
    %377 = math.tanh %376 : vector<2x32xf32>
    %cst_81 = arith.constant 1.000000e+00 : f32
    %378 = vector.broadcast %cst_81 : f32 to vector<2x32xf32>
    %379 = arith.subf %378, %372 : vector<2x32xf32>
    %380 = arith.mulf %379, %377 : vector<2x32xf32>
    %381 = arith.mulf %372, %321 : vector<2x32xf32>
    %382 = arith.addf %380, %381 : vector<2x32xf32>
    %c6_i32 = arith.constant 6 : i32
    %383 = arith.index_cast %c6_i32 : i32 to index
    %c0_82 = arith.constant 0 : index
    %c0_83 = arith.constant 0 : index
    %384 = vector.load %arg1[%383, %c0_82, %c0_83] : memref<8x2x96xf32, #tpu.memory_space<vmem>>, vector<1x2x96xf32>
    %385 = vector.shape_cast %384 : vector<1x2x96xf32> to vector<2x96xf32>
    %cst_84 = arith.constant dense<0.000000e+00> : vector<2x96xf32>
    %386 = tpu.matmul %352, %3, %cst_84 {dimension_numbers = #tpu.dot_dimension_numbers<[1], [0], [0], [1], [0, 0, 1, 1], [], []>} : vector<2x32xf32>, vector<32x96xf32>, vector<2x96xf32> -> vector<2x96xf32>
    %387 = arith.addf %386, %8 : vector<2x96xf32>
    %388 = vector.extract_strided_slice %385 {offsets = [0, 0], sizes = [2, 32], strides = [1, 1]} : vector<2x96xf32> to vector<2x32xf32>
    %389 = vector.extract_strided_slice %387 {offsets = [0, 0], sizes = [2, 32], strides = [1, 1]} : vector<2x96xf32> to vector<2x32xf32>
    %390 = arith.addf %388, %389 : vector<2x32xf32>
    %391 = arith.negf %390 : vector<2x32xf32>
    %392 = math.exp %391 : vector<2x32xf32>
    %cst_85 = arith.constant 1.000000e+00 : f32
    %393 = vector.broadcast %cst_85 : f32 to vector<2x32xf32>
    %394 = arith.addf %393, %392 : vector<2x32xf32>
    %395 = arith.divf %393, %394 : vector<2x32xf32>
    %396 = vector.extract_strided_slice %385 {offsets = [0, 32], sizes = [2, 32], strides = [1, 1]} : vector<2x96xf32> to vector<2x32xf32>
    %397 = vector.extract_strided_slice %387 {offsets = [0, 32], sizes = [2, 32], strides = [1, 1]} : vector<2x96xf32> to vector<2x32xf32>
    %398 = arith.addf %396, %397 : vector<2x32xf32>
    %399 = arith.negf %398 : vector<2x32xf32>
    %400 = math.exp %399 : vector<2x32xf32>
    %cst_86 = arith.constant 1.000000e+00 : f32
    %401 = vector.broadcast %cst_86 : f32 to vector<2x32xf32>
    %402 = arith.addf %401, %400 : vector<2x32xf32>
    %403 = arith.divf %401, %402 : vector<2x32xf32>
    %404 = vector.extract_strided_slice %385 {offsets = [0, 64], sizes = [2, 32], strides = [1, 1]} : vector<2x96xf32> to vector<2x32xf32>
    %405 = vector.extract_strided_slice %387 {offsets = [0, 64], sizes = [2, 32], strides = [1, 1]} : vector<2x96xf32> to vector<2x32xf32>
    %406 = arith.mulf %395, %405 : vector<2x32xf32>
    %407 = arith.addf %404, %406 : vector<2x32xf32>
    %408 = math.tanh %407 : vector<2x32xf32>
    %cst_87 = arith.constant 1.000000e+00 : f32
    %409 = vector.broadcast %cst_87 : f32 to vector<2x32xf32>
    %410 = arith.subf %409, %403 : vector<2x32xf32>
    %411 = arith.mulf %410, %408 : vector<2x32xf32>
    %412 = arith.mulf %403, %352 : vector<2x32xf32>
    %413 = arith.addf %411, %412 : vector<2x32xf32>
    %cst_88 = arith.constant dense<0.000000e+00> : vector<2x96xf32>
    %414 = tpu.matmul %413, %4, %cst_88 {dimension_numbers = #tpu.dot_dimension_numbers<[1], [0], [0], [1], [0, 0, 1, 1], [], []>} : vector<2x32xf32>, vector<32x96xf32>, vector<2x96xf32> -> vector<2x96xf32>
    %415 = arith.addf %414, %11 : vector<2x96xf32>
    %cst_89 = arith.constant dense<0.000000e+00> : vector<2x96xf32>
    %416 = tpu.matmul %382, %5, %cst_89 {dimension_numbers = #tpu.dot_dimension_numbers<[1], [0], [0], [1], [0, 0, 1, 1], [], []>} : vector<2x32xf32>, vector<32x96xf32>, vector<2x96xf32> -> vector<2x96xf32>
    %417 = arith.addf %416, %14 : vector<2x96xf32>
    %418 = vector.extract_strided_slice %415 {offsets = [0, 0], sizes = [2, 32], strides = [1, 1]} : vector<2x96xf32> to vector<2x32xf32>
    %419 = vector.extract_strided_slice %417 {offsets = [0, 0], sizes = [2, 32], strides = [1, 1]} : vector<2x96xf32> to vector<2x32xf32>
    %420 = arith.addf %418, %419 : vector<2x32xf32>
    %421 = arith.negf %420 : vector<2x32xf32>
    %422 = math.exp %421 : vector<2x32xf32>
    %cst_90 = arith.constant 1.000000e+00 : f32
    %423 = vector.broadcast %cst_90 : f32 to vector<2x32xf32>
    %424 = arith.addf %423, %422 : vector<2x32xf32>
    %425 = arith.divf %423, %424 : vector<2x32xf32>
    %426 = vector.extract_strided_slice %415 {offsets = [0, 32], sizes = [2, 32], strides = [1, 1]} : vector<2x96xf32> to vector<2x32xf32>
    %427 = vector.extract_strided_slice %417 {offsets = [0, 32], sizes = [2, 32], strides = [1, 1]} : vector<2x96xf32> to vector<2x32xf32>
    %428 = arith.addf %426, %427 : vector<2x32xf32>
    %429 = arith.negf %428 : vector<2x32xf32>
    %430 = math.exp %429 : vector<2x32xf32>
    %cst_91 = arith.constant 1.000000e+00 : f32
    %431 = vector.broadcast %cst_91 : f32 to vector<2x32xf32>
    %432 = arith.addf %431, %430 : vector<2x32xf32>
    %433 = arith.divf %431, %432 : vector<2x32xf32>
    %434 = vector.extract_strided_slice %415 {offsets = [0, 64], sizes = [2, 32], strides = [1, 1]} : vector<2x96xf32> to vector<2x32xf32>
    %435 = vector.extract_strided_slice %417 {offsets = [0, 64], sizes = [2, 32], strides = [1, 1]} : vector<2x96xf32> to vector<2x32xf32>
    %436 = arith.mulf %425, %435 : vector<2x32xf32>
    %437 = arith.addf %434, %436 : vector<2x32xf32>
    %438 = math.tanh %437 : vector<2x32xf32>
    %cst_92 = arith.constant 1.000000e+00 : f32
    %439 = vector.broadcast %cst_92 : f32 to vector<2x32xf32>
    %440 = arith.subf %439, %433 : vector<2x32xf32>
    %441 = arith.mulf %440, %438 : vector<2x32xf32>
    %442 = arith.mulf %433, %382 : vector<2x32xf32>
    %443 = arith.addf %441, %442 : vector<2x32xf32>
    %c7_i32 = arith.constant 7 : i32
    %444 = arith.index_cast %c7_i32 : i32 to index
    %c0_93 = arith.constant 0 : index
    %c0_94 = arith.constant 0 : index
    %445 = vector.load %arg1[%444, %c0_93, %c0_94] : memref<8x2x96xf32, #tpu.memory_space<vmem>>, vector<1x2x96xf32>
    %446 = vector.shape_cast %445 : vector<1x2x96xf32> to vector<2x96xf32>
    %cst_95 = arith.constant dense<0.000000e+00> : vector<2x96xf32>
    %447 = tpu.matmul %413, %3, %cst_95 {dimension_numbers = #tpu.dot_dimension_numbers<[1], [0], [0], [1], [0, 0, 1, 1], [], []>} : vector<2x32xf32>, vector<32x96xf32>, vector<2x96xf32> -> vector<2x96xf32>
    %448 = arith.addf %447, %8 : vector<2x96xf32>
    %449 = vector.extract_strided_slice %446 {offsets = [0, 0], sizes = [2, 32], strides = [1, 1]} : vector<2x96xf32> to vector<2x32xf32>
    %450 = vector.extract_strided_slice %448 {offsets = [0, 0], sizes = [2, 32], strides = [1, 1]} : vector<2x96xf32> to vector<2x32xf32>
    %451 = arith.addf %449, %450 : vector<2x32xf32>
    %452 = arith.negf %451 : vector<2x32xf32>
    %453 = math.exp %452 : vector<2x32xf32>
    %cst_96 = arith.constant 1.000000e+00 : f32
    %454 = vector.broadcast %cst_96 : f32 to vector<2x32xf32>
    %455 = arith.addf %454, %453 : vector<2x32xf32>
    %456 = arith.divf %454, %455 : vector<2x32xf32>
    %457 = vector.extract_strided_slice %446 {offsets = [0, 32], sizes = [2, 32], strides = [1, 1]} : vector<2x96xf32> to vector<2x32xf32>
    %458 = vector.extract_strided_slice %448 {offsets = [0, 32], sizes = [2, 32], strides = [1, 1]} : vector<2x96xf32> to vector<2x32xf32>
    %459 = arith.addf %457, %458 : vector<2x32xf32>
    %460 = arith.negf %459 : vector<2x32xf32>
    %461 = math.exp %460 : vector<2x32xf32>
    %cst_97 = arith.constant 1.000000e+00 : f32
    %462 = vector.broadcast %cst_97 : f32 to vector<2x32xf32>
    %463 = arith.addf %462, %461 : vector<2x32xf32>
    %464 = arith.divf %462, %463 : vector<2x32xf32>
    %465 = vector.extract_strided_slice %446 {offsets = [0, 64], sizes = [2, 32], strides = [1, 1]} : vector<2x96xf32> to vector<2x32xf32>
    %466 = vector.extract_strided_slice %448 {offsets = [0, 64], sizes = [2, 32], strides = [1, 1]} : vector<2x96xf32> to vector<2x32xf32>
    %467 = arith.mulf %456, %466 : vector<2x32xf32>
    %468 = arith.addf %465, %467 : vector<2x32xf32>
    %469 = math.tanh %468 : vector<2x32xf32>
    %cst_98 = arith.constant 1.000000e+00 : f32
    %470 = vector.broadcast %cst_98 : f32 to vector<2x32xf32>
    %471 = arith.subf %470, %464 : vector<2x32xf32>
    %472 = arith.mulf %471, %469 : vector<2x32xf32>
    %473 = arith.mulf %464, %413 : vector<2x32xf32>
    %474 = arith.addf %472, %473 : vector<2x32xf32>
    %cst_99 = arith.constant dense<0.000000e+00> : vector<2x96xf32>
    %475 = tpu.matmul %474, %4, %cst_99 {dimension_numbers = #tpu.dot_dimension_numbers<[1], [0], [0], [1], [0, 0, 1, 1], [], []>} : vector<2x32xf32>, vector<32x96xf32>, vector<2x96xf32> -> vector<2x96xf32>
    %476 = arith.addf %475, %11 : vector<2x96xf32>
    %cst_100 = arith.constant dense<0.000000e+00> : vector<2x96xf32>
    %477 = tpu.matmul %443, %5, %cst_100 {dimension_numbers = #tpu.dot_dimension_numbers<[1], [0], [0], [1], [0, 0, 1, 1], [], []>} : vector<2x32xf32>, vector<32x96xf32>, vector<2x96xf32> -> vector<2x96xf32>
    %478 = arith.addf %477, %14 : vector<2x96xf32>
    %479 = vector.extract_strided_slice %476 {offsets = [0, 0], sizes = [2, 32], strides = [1, 1]} : vector<2x96xf32> to vector<2x32xf32>
    %480 = vector.extract_strided_slice %478 {offsets = [0, 0], sizes = [2, 32], strides = [1, 1]} : vector<2x96xf32> to vector<2x32xf32>
    %481 = arith.addf %479, %480 : vector<2x32xf32>
    %482 = arith.negf %481 : vector<2x32xf32>
    %483 = math.exp %482 : vector<2x32xf32>
    %cst_101 = arith.constant 1.000000e+00 : f32
    %484 = vector.broadcast %cst_101 : f32 to vector<2x32xf32>
    %485 = arith.addf %484, %483 : vector<2x32xf32>
    %486 = arith.divf %484, %485 : vector<2x32xf32>
    %487 = vector.extract_strided_slice %476 {offsets = [0, 32], sizes = [2, 32], strides = [1, 1]} : vector<2x96xf32> to vector<2x32xf32>
    %488 = vector.extract_strided_slice %478 {offsets = [0, 32], sizes = [2, 32], strides = [1, 1]} : vector<2x96xf32> to vector<2x32xf32>
    %489 = arith.addf %487, %488 : vector<2x32xf32>
    %490 = arith.negf %489 : vector<2x32xf32>
    %491 = math.exp %490 : vector<2x32xf32>
    %cst_102 = arith.constant 1.000000e+00 : f32
    %492 = vector.broadcast %cst_102 : f32 to vector<2x32xf32>
    %493 = arith.addf %492, %491 : vector<2x32xf32>
    %494 = arith.divf %492, %493 : vector<2x32xf32>
    %495 = vector.extract_strided_slice %476 {offsets = [0, 64], sizes = [2, 32], strides = [1, 1]} : vector<2x96xf32> to vector<2x32xf32>
    %496 = vector.extract_strided_slice %478 {offsets = [0, 64], sizes = [2, 32], strides = [1, 1]} : vector<2x96xf32> to vector<2x32xf32>
    %497 = arith.mulf %486, %496 : vector<2x32xf32>
    %498 = arith.addf %495, %497 : vector<2x32xf32>
    %499 = math.tanh %498 : vector<2x32xf32>
    %cst_103 = arith.constant 1.000000e+00 : f32
    %500 = vector.broadcast %cst_103 : f32 to vector<2x32xf32>
    %501 = arith.subf %500, %494 : vector<2x32xf32>
    %502 = arith.mulf %501, %499 : vector<2x32xf32>
    %503 = arith.mulf %494, %443 : vector<2x32xf32>
    %504 = arith.addf %502, %503 : vector<2x32xf32>
    %c8_i32 = arith.constant 8 : i32
    %c0_104 = arith.constant 0 : index
    %c0_105 = arith.constant 0 : index
    %505 = vector.load %arg10[%c0_104, %c0_105] : memref<2x32xf32, #tpu.memory_space<vmem>>, vector<2x32xf32>
    tpu.vector_store %arg10[%c0_104, %c0_105], %474 {strides = array<i32>} : memref<2x32xf32, #tpu.memory_space<vmem>>, vector<2x32xf32>,
    %c0_106 = arith.constant 0 : index
    %c0_107 = arith.constant 0 : index
    %506 = vector.load %arg11[%c0_106, %c0_107] : memref<2x32xf32, #tpu.memory_space<vmem>>, vector<2x32xf32>
    tpu.vector_store %arg11[%c0_106, %c0_107], %504 {strides = array<i32>} : memref<2x32xf32, #tpu.memory_space<vmem>>, vector<2x32xf32>,
    %c0_108 = arith.constant 0 : index
    %c0_109 = arith.constant 0 : index
    %507 = vector.load %arg8[%c0_108, %c0_109] : memref<2x32xf32, #tpu.memory_space<vmem>>, vector<2x32xf32>
    tpu.vector_store %arg8[%c0_108, %c0_109], %474 {strides = array<i32>} : memref<2x32xf32, #tpu.memory_space<vmem>>, vector<2x32xf32>,
    %c0_110 = arith.constant 0 : index
    %c0_111 = arith.constant 0 : index
    %508 = vector.load %arg9[%c0_110, %c0_111] : memref<2x32xf32, #tpu.memory_space<vmem>>, vector<2x32xf32>
    tpu.vector_store %arg9[%c0_110, %c0_111], %504 {strides = array<i32>} : memref<2x32xf32, #tpu.memory_space<vmem>>, vector<2x32xf32>,
    return
  }
  func.func @transform_0(%arg0: i32) -> (i32, i32, i32) {
    %c0_i32 = arith.constant 0 : i32
    %c0_i32_0 = arith.constant 0 : i32
    %c0_i32_1 = arith.constant 0 : i32
    return %arg0, %c0_i32, %c0_i32_0 : i32, i32, i32
  }
  func.func @transform_1(%arg0: i32) -> (i32, i32) {
    %c0_i32 = arith.constant 0 : i32
    %c0_i32_0 = arith.constant 0 : i32
    %c0_i32_1 = arith.constant 0 : i32
    return %c0_i32, %c0_i32_0 : i32, i32
  }
  func.func @transform_2(%arg0: i32) -> (i32, i32) {
    %c0_i32 = arith.constant 0 : i32
    %c0_i32_0 = arith.constant 0 : i32
    %c0_i32_1 = arith.constant 0 : i32
    return %c0_i32, %c0_i32_0 : i32, i32
  }
  func.func @transform_3(%arg0: i32) -> (i32, i32) {
    %c0_i32 = arith.constant 0 : i32
    %c0_i32_0 = arith.constant 0 : i32
    %c0_i32_1 = arith.constant 0 : i32
    return %c0_i32, %c0_i32_0 : i32, i32
  }
  func.func @transform_4(%arg0: i32) -> (i32, i32) {
    %c0_i32 = arith.constant 0 : i32
    %c0_i32_0 = arith.constant 0 : i32
    %c0_i32_1 = arith.constant 0 : i32
    return %c0_i32, %c0_i32_0 : i32, i32
  }
  func.func @transform_5(%arg0: i32) -> (i32, i32) {
    %c0_i32 = arith.constant 0 : i32
    %c0_i32_0 = arith.constant 0 : i32
    %c0_i32_1 = arith.constant 0 : i32
    return %c0_i32, %c0_i32_0 : i32, i32
  }
  func.func @transform_6(%arg0: i32) -> (i32, i32) {
    %c0_i32 = arith.constant 0 : i32
    %c0_i32_0 = arith.constant 0 : i32
    %c0_i32_1 = arith.constant 0 : i32
    return %c0_i32, %c0_i32_0 : i32, i32
  }
  func.func @transform_7(%arg0: i32) -> (i32, i32) {
    %c0_i32 = arith.constant 0 : i32
    %c0_i32_0 = arith.constant 0 : i32
    %c0_i32_1 = arith.constant 0 : i32
    return %c0_i32, %c0_i32_0 : i32, i32
  }
  func.func @transform_8(%arg0: i32) -> (i32, i32) {
    %c0_i32 = arith.constant 0 : i32
    %c0_i32_0 = arith.constant 0 : i32
    %c0_i32_1 = arith.constant 0 : i32
    return %c0_i32, %c0_i32_0 : i32, i32
  }
}

</mosaic_0001>

<llo_original>
// kernel: multitask_gru_forward.1
$region0: #{multitask_gru_forward.1}
  #allocation0 [shape = 'u32[]', space=smem, size = 0x4, offset = 0x4, fixed_abs, tag = 'smem constant byte address 0x4 - core index']
  #allocation1 [shape = 'u32[72,128]{1,0:T(1,128)}', space=vmem, size = 0x9000, scoped, tag = 'internal scratch']
  #allocation2 [shape = 'f32[2,32]{1,0:T(2,128)}', space=vmem, size = 0x400, scoped, tag = 'scratch operand']
  #allocation3 [shape = 'f32[2,32]{1,0:T(2,128)}', space=vmem, size = 0x400, scoped, tag = 'scratch operand']
  %s0 = inlined_call_operand.vmem [shape: f32[8,2,96], index: 0, kind: input, shape index: {}]
  %s1 = inlined_call_operand.vmem [shape: f32[32,96], index: 1, kind: input, shape index: {}]
  %s2 = inlined_call_operand.vmem [shape: f32[1,96], index: 2, kind: input, shape index: {}]
  %s3 = inlined_call_operand.hbm [shape: f32[32,96], index: 3, kind: input, shape index: {}]
  %s4 = inlined_call_operand.vmem [shape: f32[1,96], index: 4, kind: input, shape index: {}]
  %s5 = inlined_call_operand.hbm [shape: f32[32,96], index: 5, kind: input, shape index: {}]
  %s6 = inlined_call_operand.vmem [shape: f32[1,96], index: 6, kind: input, shape index: {}]
  %s7 = inlined_call_operand.vmem [shape: f32[2,32], index: 7, kind: output, shape index: {0}]
  %s8 = inlined_call_operand.vmem [shape: f32[2,32], index: 8, kind: output, shape index: {1}]
  %9 = xla_tuple %s7, %s8
  %s10 = sld [smem:[#allocation0]]
  $region58: #{multitask_gru_forward.1} parent=0
    _
  %s12 = ssub.s32 1, %s10
  %s13 = scalar_select 0, %s12, %s10
  $region1: #{multitask_gru_forward.1} parent=0
    #allocation4 [shape = 'u8[16384]{0}', space=vmem, size = 0x4000, scoped, tag = 'input window, operand 3, single buffered']
    #allocation5 [shape = 's32[1]{0}', space=sflag, size = 0x4, scoped, tag = 'scoped memory for multitask_gru_forward.1']
    #allocation6 [shape = 'u8[16384]{0}', space=vmem, size = 0x4000, scoped, tag = 'input window, operand 5, single buffered']
    #allocation7 [shape = 's32[1]{0}', space=sflag, size = 0x4, scoped, tag = 'scoped memory for multitask_gru_forward.1']
    %14 = vsyncpa [#allocation5], 0
    %15 = vsyncpa [#allocation7], 0
    // Predicated region
    $region2: #{multitask_gru_forward.1} parent=1 // pred_check
      _
    $region3: #{multitask_gru_forward.1} parent=1 // pred_check_branch
      %17 = sbr.rel (0) target = $region5
    $region4: #{multitask_gru_forward.1} parent=1 // pred_region
      _
    $region5: #{multitask_gru_forward.1} parent=1 // pred_fallthru
      _
    // Predicated region
    $region6: #{multitask_gru_forward.1} parent=1 // pred_check
      _
    $region7: #{multitask_gru_forward.1} parent=1 // pred_check_branch
      %19 = sbr.rel (0) target = $region9
    $region8: #{multitask_gru_forward.1} parent=1 // pred_region
      _
    $region9: #{multitask_gru_forward.1} parent=1 // pred_fallthru
      _
    // Predicated region
    $region10: #{multitask_gru_forward.1} parent=1 // pred_check
      _
    $region11: #{multitask_gru_forward.1} parent=1 // pred_check_branch
      %21 = sbr.rel (0) target = $region13
    $region12: #{multitask_gru_forward.1} parent=1 // pred_region
      _
    $region13: #{multitask_gru_forward.1} parent=1 // pred_fallthru
      _
    // Predicated region
    $region14: #{multitask_gru_forward.1} parent=1 // pred_check
      _
    $region15: #{multitask_gru_forward.1} parent=1 // pred_check_branch
      %23 = sbr.rel (0) target = $region17
    $region16: #{multitask_gru_forward.1} parent=1 // pred_region
      %25 = vsyncadd [#allocation5], 0
      %s26 = sshll.u32 %s3, 4
      %s27 = int_to_ptr.hbm [resolvable:$true] %s26
      %s28 = sshll.u32 [#allocation4], 4
      %s29 = int_to_ptr.vmem [resolvable:$true] %s28
      %34 = dma.hbm_to_vmem [thread:$0]  %s27, 512, %s29, [#allocation5], 128, 128, 8
    $region17: #{multitask_gru_forward.1} parent=1 // pred_fallthru
      _
    // Predicated region
    $region18: #{multitask_gru_forward.1} parent=1 // pred_check
      _
    $region19: #{multitask_gru_forward.1} parent=1 // pred_check_branch
      %36 = sbr.rel (0) target = $region21
    $region20: #{multitask_gru_forward.1} parent=1 // pred_region
      _
    $region21: #{multitask_gru_forward.1} parent=1 // pred_fallthru
      _
    // Predicated region
    $region22: #{multitask_gru_forward.1} parent=1 // pred_check
      _
    $region23: #{multitask_gru_forward.1} parent=1 // pred_check_branch
      %38 = sbr.rel (0) target = $region25
    $region24: #{multitask_gru_forward.1} parent=1 // pred_region
      %40 = vsyncadd [#allocation7], 0
      %s41 = sshll.u32 %s5, 4
      %s42 = int_to_ptr.hbm [resolvable:$true] %s41
      %s43 = sshll.u32 [#allocation6], 4
      %s44 = int_to_ptr.vmem [resolvable:$true] %s43
      %49 = dma.hbm_to_vmem [thread:$0]  %s42, 512, %s44, [#allocation7], 128, 128, 8
    $region25: #{multitask_gru_forward.1} parent=1 // pred_fallthru
      _
    // Predicated region
    $region26: #{multitask_gru_forward.1} parent=1 // pred_check
      _
    $region27: #{multitask_gru_forward.1} parent=1 // pred_check_branch
      %51 = sbr.rel (0) target = $region29
    $region28: #{multitask_gru_forward.1} parent=1 // pred_region
      _
    $region29: #{multitask_gru_forward.1} parent=1 // pred_fallthru
      _
    // Predicated region
    $region30: #{multitask_gru_forward.1} parent=1 // pred_check
      _
    $region31: #{multitask_gru_forward.1} parent=1 // pred_check_branch
      %53 = sbr.rel (0) target = $region33
    $region32: #{multitask_gru_forward.1} parent=1 // pred_region
      %55 = dma.done [#allocation5], 512
    $region33: #{multitask_gru_forward.1} parent=1 // pred_fallthru
      _
    // Predicated region
    $region34: #{multitask_gru_forward.1} parent=1 // pred_check
      _
    $region35: #{multitask_gru_forward.1} parent=1 // pred_check_branch
      %57 = sbr.rel (0) target = $region37
    $region36: #{multitask_gru_forward.1} parent=1 // pred_region
      %59 = dma.done [#allocation7], 512
    $region37: #{multitask_gru_forward.1} parent=1 // pred_fallthru
      _
    %p60 = scmp.eq.s32.totalorder 0, 0
    // Predicated region
    $region38: #{multitask_gru_forward.1} parent=1 // pred_check
      %p61 = pneg %p60
    $region39: #{multitask_gru_forward.1} parent=1 // pred_check_branch
      %63 = sbr.rel (%p61) target = $region41
    $region40: #{multitask_gru_forward.1} parent=1 // pred_region
      %vm64 = vcmask 254976
      %65 = vst.msk [vmem:[#allocation2] sm:$0x3] %vm64, 0.0
      %66 = vst.msk [vmem:[#allocation3] sm:$0x3] %vm64, 0.0
    $region41: #{multitask_gru_forward.1} parent=1 // pred_fallthru
      _
    %v67 = vld [vmem:[%s1] sm:$0xff]
    %v68 = vld [vmem:[%s1 + $0x8] sm:$0xff]
    %v69 = vld [vmem:[%s1 + $0x10] sm:$0xff]
    %v70 = vld [vmem:[%s1 + $0x18] sm:$0xff]
    %v71 = vld [vmem:[#allocation4] sm:$0xff]
    %v72 = vld [vmem:[#allocation4 + $0x8] sm:$0xff]
    %v73 = vld [vmem:[#allocation4 + $0x10] sm:$0xff]
    %v74 = vld [vmem:[#allocation4 + $0x18] sm:$0xff]
    %v75 = vld [vmem:[#allocation6] sm:$0xff]
    %v76 = vld [vmem:[#allocation6 + $0x8] sm:$0xff]
    %v77 = vld [vmem:[#allocation6 + $0x10] sm:$0xff]
    %v78 = vld [vmem:[#allocation6 + $0x18] sm:$0xff]
    %v79 = vld [vmem:[%s2] sm:$0x1]
    %v81 = vperm.slane %v79, 0
    %v83 = vld [vmem:[%s4] sm:$0x1]
    %v85 = vperm.slane %v83, 0
    %v87 = vld [vmem:[%s6] sm:$0x1]
    %v89 = vperm.slane %v87, 0
    %v91 = vld [vmem:[#allocation2] sm:$0x3]
    %v92 = vld [vmem:[#allocation3] sm:$0x3]
    %v93 = vld [vmem:[%s0] sm:$0x3]
    %vm94 = vcmask 261120
    %v96 = vsel %vm94, %v91, 0
    %98 = vmatpush.msra.mxu0 0.0
    %99 = vmatpush.msra.mxu0 0.0
    %100 = vmatpush.msra.mxu0 0.0
    %101 = vmatpush.msra.mxu0 0.0
    %102 = vmatpush.msra.mxu0 0.0
    %103 = vmatpush.msra.mxu0 0.0
    %104 = vmatpush.msra.mxu0 0.0
    %105 = vmatpush.msra.mxu0 0.0
    %106 = vmatpush.msra.mxu0 0.0
    %107 = vmatpush.msra.mxu0 0.0
    %108 = vmatpush.msra.mxu0 0.0
    %109 = vmatpush.msra.mxu0 0.0
    %110 = vmatpush.msra.mxu0 %v70
    %111 = vmatpush.msra.mxu0 %v69
    %112 = vmatpush.msra.mxu0 %v68
    %113 = vmatpush.msra.mxu0 %v67
    %114 = vmatmul.f32.gmra.mxu0 %v96
    %v115 = vpop.f32.mrf.mxu0
    %v116 = vadd.f32 %v81, %v115
    %117 = vdwg.mxu0
    %v118 = vadd.f32 %v93, %v116
    %v119 = vxor.u32 %v118, 2147483648
    %v120 = vmul.f32 %v119, 1.442695
    %v121 = vpow.pop %v120
    %v122 = vadd.f32 %v121, 1.0
    %v123 = vrcp.pop %v122
    %v124 = vmul.f32 %v122, %v123
    %v125 = vsub.f32 1.0, %v124
    %v126 = vmul.f32 %v123, %v125
    %v127 = vadd.f32 %v123, %v126
    %vm128 = vweird.f32 %v122
    %vm129 = vweird.f32 %v123
    %vm130 = vmor %vm128, %vm129
    %v131 = vsel %vm130, %v123, %v127
    %v132 = vand.u32 2147483647, %v122
    %vm133 = vcmp.eq.f32.partialorder %v132, 8.507059e+37
    %v134 = vand.u32 %v122, 2147483648
    %v135 = vor.u32 1.1754944e-38, %v134
    %v136 = vsel %vm133, %v135, %v131
    %v137 = vmul.f32 1.0, %v136
    %139 = vrot.lane.b32.xlu0 %v116, 64
    %v140 = vpop.permute.xlu0 %139
    %v142 = vmul.f32 %v137, %v140
    %144 = vrot.lane.b32.xlu0 %v142, 64
    %v145 = vpop.permute.xlu0 %144
    %v147 = vadd.f32 %v93, %v145
    %v148 = vtanh.pop %v147
    %v149 = vsub.f32 1.0, %v137
    %151 = vrot.lane.b32.xlu0 %v148, 96
    %v152 = vpop.permute.xlu0 %151
    %v154 = vmul.f32 %v149, %v152
    %155 = vrot.lane.b32.xlu0 %v91, 32
    %v156 = vpop.permute.xlu0 %155
    %v158 = vmul.f32 %v137, %v156
    %v159 = vadd.f32 %v154, %v158
    %161 = vrot.lane.b32.xlu0 %v159, 96
    %v162 = vpop.permute.xlu0 %161
    %v163 = vsel %vm94, %v162, 0
    %165 = vmatpush.msra.mxu0 0.0
    %166 = vmatpush.msra.mxu0 0.0
    %167 = vmatpush.msra.mxu0 0.0
    %168 = vmatpush.msra.mxu0 0.0
    %169 = vmatpush.msra.mxu0 0.0
    %170 = vmatpush.msra.mxu0 0.0
    %171 = vmatpush.msra.mxu0 0.0
    %172 = vmatpush.msra.mxu0 0.0
    %173 = vmatpush.msra.mxu0 0.0
    %174 = vmatpush.msra.mxu0 0.0
    %175 = vmatpush.msra.mxu0 0.0
    %176 = vmatpush.msra.mxu0 0.0
    %177 = vmatpush.msra.mxu0 %v74
    %178 = vmatpush.msra.mxu0 %v73
    %179 = vmatpush.msra.mxu0 %v72
    %180 = vmatpush.msra.mxu0 %v71
    %181 = vmatmul.f32.gmra.mxu0 %v163
    %v182 = vpop.f32.mrf.mxu0
    %v183 = vadd.f32 %v85, %v182
    %184 = vdwg.mxu0
    %v186 = vsel %vm94, %v92, 0
    %188 = vmatpush.msra.mxu0 0.0
    %189 = vmatpush.msra.mxu0 0.0
    %190 = vmatpush.msra.mxu0 0.0
    %191 = vmatpush.msra.mxu0 0.0
    %192 = vmatpush.msra.mxu0 0.0
    %193 = vmatpush.msra.mxu0 0.0
    %194 = vmatpush.msra.mxu0 0.0
    %195 = vmatpush.msra.mxu0 0.0
    %196 = vmatpush.msra.mxu0 0.0
    %197 = vmatpush.msra.mxu0 0.0
    %198 = vmatpush.msra.mxu0 0.0
    %199 = vmatpush.msra.mxu0 0.0
    %200 = vmatpush.msra.mxu0 %v78
    %201 = vmatpush.msra.mxu0 %v77
    %202 = vmatpush.msra.mxu0 %v76
    %203 = vmatpush.msra.mxu0 %v75
    %204 = vmatmul.f32.gmra.mxu0 %v186
    %v205 = vpop.f32.mrf.mxu0
    %v206 = vadd.f32 %v89, %v205
    %207 = vdwg.mxu0
    %v208 = vadd.f32 %v183, %v206
    %v209 = vxor.u32 %v208, 2147483648
    %v210 = vmul.f32 %v209, 1.442695
    %v211 = vpow.pop %v210
    %v212 = vadd.f32 %v211, 1.0
    %v213 = vrcp.pop %v212
    %v214 = vmul.f32 %v212, %v213
    %v215 = vsub.f32 1.0, %v214
    %v216 = vmul.f32 %v213, %v215
    %v217 = vadd.f32 %v213, %v216
    %vm218 = vweird.f32 %v212
    %vm219 = vweird.f32 %v213
    %vm220 = vmor %vm218, %vm219
    %v221 = vsel %vm220, %v213, %v217
    %v222 = vand.u32 2147483647, %v212
    %vm223 = vcmp.eq.f32.partialorder %v222, 8.507059e+37
    %v224 = vand.u32 %v212, 2147483648
    %v225 = vor.u32 1.1754944e-38, %v224
    %v226 = vsel %vm223, %v225, %v221
    %v227 = vmul.f32 1.0, %v226
    %229 = vrot.lane.b32.xlu0 %v206, 64
    %v230 = vpop.permute.xlu0 %229
    %v232 = vmul.f32 %v227, %v230
    %234 = vrot.lane.b32.xlu0 %v232, 64
    %v235 = vpop.permute.xlu0 %234
    %v237 = vadd.f32 %v183, %v235
    %v238 = vtanh.pop %v237
    %v239 = vsub.f32 1.0, %v227
    %241 = vrot.lane.b32.xlu0 %v238, 96
    %v242 = vpop.permute.xlu0 %241
    %v244 = vmul.f32 %v239, %v242
    %245 = vrot.lane.b32.xlu0 %v92, 32
    %v246 = vpop.permute.xlu0 %245
    %v248 = vmul.f32 %v227, %v246
    %v249 = vadd.f32 %v244, %v248
    %s250 = scalar_lea.vmem %s0, 2
    %v251 = vld [vmem:[%s250] sm:$0x3]
    %252 = vmatpush.msra.mxu0 0.0
    %253 = vmatpush.msra.mxu0 0.0
    %254 = vmatpush.msra.mxu0 0.0
    %255 = vmatpush.msra.mxu0 0.0
    %256 = vmatpush.msra.mxu0 0.0
    %257 = vmatpush.msra.mxu0 0.0
    %258 = vmatpush.msra.mxu0 0.0
    %259 = vmatpush.msra.mxu0 0.0
    %260 = vmatpush.msra.mxu0 0.0
    %261 = vmatpush.msra.mxu0 0.0
    %262 = vmatpush.msra.mxu0 0.0
    %263 = vmatpush.msra.mxu0 0.0
    %264 = vmatpush.msra.mxu0 %v70
    %265 = vmatpush.msra.mxu0 %v69
    %266 = vmatpush.msra.mxu0 %v68
    %267 = vmatpush.msra.mxu0 %v67
    %268 = vmatmul.f32.gmra.mxu0 %v163
    %v269 = vpop.f32.mrf.mxu0
    %v270 = vadd.f32 %v81, %v269
    %271 = vdwg.mxu0
    %v272 = vadd.f32 %v251, %v270
    %v273 = vxor.u32 %v272, 2147483648
    %v274 = vmul.f32 %v273, 1.442695
    %v275 = vpow.pop %v274
    %v276 = vadd.f32 %v275, 1.0
    %v277 = vrcp.pop %v276
    %v278 = vmul.f32 %v276, %v277
    %v279 = vsub.f32 1.0, %v278
    %v280 = vmul.f32 %v277, %v279
    %v281 = vadd.f32 %v277, %v280
    %vm282 = vweird.f32 %v276
    %vm283 = vweird.f32 %v277
    %vm284 = vmor %vm282, %vm283
    %v285 = vsel %vm284, %v277, %v281
    %v286 = vand.u32 2147483647, %v276
    %vm287 = vcmp.eq.f32.partialorder %v286, 8.507059e+37
    %v288 = vand.u32 %v276, 2147483648
    %v289 = vor.u32 1.1754944e-38, %v288
    %v290 = vsel %vm287, %v289, %v285
    %v291 = vmul.f32 1.0, %v290
    %293 = vrot.lane.b32.xlu0 %v270, 64
    %v294 = vpop.permute.xlu0 %293
    %v296 = vmul.f32 %v291, %v294
    %298 = vrot.lane.b32.xlu0 %v296, 64
    %v299 = vpop.permute.xlu0 %298
    %v301 = vadd.f32 %v251, %v299
    %v302 = vtanh.pop %v301
    %v303 = vsub.f32 1.0, %v291
    %305 = vrot.lane.b32.xlu0 %v302, 96
    %v306 = vpop.permute.xlu0 %305
    %v308 = vmul.f32 %v303, %v306
    %v309 = vmul.f32 %v291, %v159
    %v310 = vadd.f32 %v308, %v309
    %312 = vrot.lane.b32.xlu0 %v310, 96
    %v313 = vpop.permute.xlu0 %312
    %v314 = vsel %vm94, %v313, 0
    %316 = vmatpush.msra.mxu0 0.0
    %317 = vmatpush.msra.mxu0 0.0
    %318 = vmatpush.msra.mxu0 0.0
    %319 = vmatpush.msra.mxu0 0.0
    %320 = vmatpush.msra.mxu0 0.0
    %321 = vmatpush.msra.mxu0 0.0
    %322 = vmatpush.msra.mxu0 0.0
    %323 = vmatpush.msra.mxu0 0.0
    %324 = vmatpush.msra.mxu0 0.0
    %325 = vmatpush.msra.mxu0 0.0
    %326 = vmatpush.msra.mxu0 0.0
    %327 = vmatpush.msra.mxu0 0.0
    %328 = vmatpush.msra.mxu0 %v74
    %329 = vmatpush.msra.mxu0 %v73
    %330 = vmatpush.msra.mxu0 %v72
    %331 = vmatpush.msra.mxu0 %v71
    %332 = vmatmul.f32.gmra.mxu0 %v314
    %v333 = vpop.f32.mrf.mxu0
    %v334 = vadd.f32 %v85, %v333
    %335 = vdwg.mxu0
    %337 = vrot.lane.b32.xlu0 %v249, 96
    %v338 = vpop.permute.xlu0 %337
    %v339 = vsel %vm94, %v338, 0
    %341 = vmatpush.msra.mxu0 0.0
    %342 = vmatpush.msra.mxu0 0.0
    %343 = vmatpush.msra.mxu0 0.0
    %344 = vmatpush.msra.mxu0 0.0
    %345 = vmatpush.msra.mxu0 0.0
    %346 = vmatpush.msra.mxu0 0.0
    %347 = vmatpush.msra.mxu0 0.0
    %348 = vmatpush.msra.mxu0 0.0
    %349 = vmatpush.msra.mxu0 0.0
    %350 = vmatpush.msra.mxu0 0.0
    %351 = vmatpush.msra.mxu0 0.0
    %352 = vmatpush.msra.mxu0 0.0
    %353 = vmatpush.msra.mxu0 %v78
    %354 = vmatpush.msra.mxu0 %v77
    %355 = vmatpush.msra.mxu0 %v76
    %356 = vmatpush.msra.mxu0 %v75
    %357 = vmatmul.f32.gmra.mxu0 %v339
    %v358 = vpop.f32.mrf.mxu0
    %v359 = vadd.f32 %v89, %v358
    %360 = vdwg.mxu0
    %v361 = vadd.f32 %v334, %v359
    %v362 = vxor.u32 %v361, 2147483648
    %v363 = vmul.f32 %v362, 1.442695
    %v364 = vpow.pop %v363
    %v365 = vadd.f32 %v364, 1.0
    %v366 = vrcp.pop %v365
    %v367 = vmul.f32 %v365, %v366
    %v368 = vsub.f32 1.0, %v367
    %v369 = vmul.f32 %v366, %v368
    %v370 = vadd.f32 %v366, %v369
    %vm371 = vweird.f32 %v365
    %vm372 = vweird.f32 %v366
    %vm373 = vmor %vm371, %vm372
    %v374 = vsel %vm373, %v366, %v370
    %v375 = vand.u32 2147483647, %v365
    %vm376 = vcmp.eq.f32.partialorder %v375, 8.507059e+37
    %v377 = vand.u32 %v365, 2147483648
    %v378 = vor.u32 1.1754944e-38, %v377
    %v379 = vsel %vm376, %v378, %v374
    %v380 = vmul.f32 1.0, %v379
    %382 = vrot.lane.b32.xlu0 %v359, 64
    %v383 = vpop.permute.xlu0 %382
    %v385 = vmul.f32 %v380, %v383
    %387 = vrot.lane.b32.xlu0 %v385, 64
    %v388 = vpop.permute.xlu0 %387
    %v390 = vadd.f32 %v334, %v388
    %v391 = vtanh.pop %v390
    %v392 = vsub.f32 1.0, %v380
    %394 = vrot.lane.b32.xlu0 %v391, 96
    %v395 = vpop.permute.xlu0 %394
    %v397 = vmul.f32 %v392, %v395
    %v398 = vmul.f32 %v380, %v249
    %v399 = vadd.f32 %v397, %v398
    %s400 = scalar_lea.vmem %s0, 4
    %v401 = vld [vmem:[%s400] sm:$0x3]
    %402 = vmatpush.msra.mxu0 0.0
    %403 = vmatpush.msra.mxu0 0.0
    %404 = vmatpush.msra.mxu0 0.0
    %405 = vmatpush.msra.mxu0 0.0
    %406 = vmatpush.msra.mxu0 0.0
    %407 = vmatpush.msra.mxu0 0.0
    %408 = vmatpush.msra.mxu0 0.0
    %409 = vmatpush.msra.mxu0 0.0
    %410 = vmatpush.msra.mxu0 0.0
    %411 = vmatpush.msra.mxu0 0.0
    %412 = vmatpush.msra.mxu0 0.0
    %413 = vmatpush.msra.mxu0 0.0
    %414 = vmatpush.msra.mxu0 %v70
    %415 = vmatpush.msra.mxu0 %v69
    %416 = vmatpush.msra.mxu0 %v68
    %417 = vmatpush.msra.mxu0 %v67
    %418 = vmatmul.f32.gmra.mxu0 %v314
    %v419 = vpop.f32.mrf.mxu0
    %v420 = vadd.f32 %v81, %v419
    %421 = vdwg.mxu0
    %v422 = vadd.f32 %v401, %v420
    %v423 = vxor.u32 %v422, 2147483648
    %v424 = vmul.f32 %v423, 1.442695
    %v425 = vpow.pop %v424
    %v426 = vadd.f32 %v425, 1.0
    %v427 = vrcp.pop %v426
    %v428 = vmul.f32 %v426, %v427
    %v429 = vsub.f32 1.0, %v428
    %v430 = vmul.f32 %v427, %v429
    %v431 = vadd.f32 %v427, %v430
    %vm432 = vweird.f32 %v426
    %vm433 = vweird.f32 %v427
    %vm434 = vmor %vm432, %vm433
    %v435 = vsel %vm434, %v427, %v431
    %v436 = vand.u32 2147483647, %v426
    %vm437 = vcmp.eq.f32.partialorder %v436, 8.507059e+37
    %v438 = vand.u32 %v426, 2147483648
    %v439 = vor.u32 1.1754944e-38, %v438
    %v440 = vsel %vm437, %v439, %v435
    %v441 = vmul.f32 1.0, %v440
    %443 = vrot.lane.b32.xlu0 %v420, 64
    %v444 = vpop.permute.xlu0 %443
    %v446 = vmul.f32 %v441, %v444
    %448 = vrot.lane.b32.xlu0 %v446, 64
    %v449 = vpop.permute.xlu0 %448
    %v451 = vadd.f32 %v401, %v449
    %v452 = vtanh.pop %v451
    %v453 = vsub.f32 1.0, %v441
    %455 = vrot.lane.b32.xlu0 %v452, 96
    %v456 = vpop.permute.xlu0 %455
    %v458 = vmul.f32 %v453, %v456
    %v459 = vmul.f32 %v441, %v310
    %v460 = vadd.f32 %v458, %v459
    %462 = vrot.lane.b32.xlu0 %v460, 96
    %v463 = vpop.permute.xlu0 %462
    %v464 = vsel %vm94, %v463, 0
    %466 = vmatpush.msra.mxu0 0.0
    %467 = vmatpush.msra.mxu0 0.0
    %468 = vmatpush.msra.mxu0 0.0
    %469 = vmatpush.msra.mxu0 0.0
    %470 = vmatpush.msra.mxu0 0.0
    %471 = vmatpush.msra.mxu0 0.0
    %472 = vmatpush.msra.mxu0 0.0
    %473 = vmatpush.msra.mxu0 0.0
    %474 = vmatpush.msra.mxu0 0.0
    %475 = vmatpush.msra.mxu0 0.0
    %476 = vmatpush.msra.mxu0 0.0
    %477 = vmatpush.msra.mxu0 0.0
    %478 = vmatpush.msra.mxu0 %v74
    %479 = vmatpush.msra.mxu0 %v73
    %480 = vmatpush.msra.mxu0 %v72
    %481 = vmatpush.msra.mxu0 %v71
    %482 = vmatmul.f32.gmra.mxu0 %v464
    %v483 = vpop.f32.mrf.mxu0
    %v484 = vadd.f32 %v85, %v483
    %485 = vdwg.mxu0
    %487 = vrot.lane.b32.xlu0 %v399, 96
    %v488 = vpop.permute.xlu0 %487
    %v489 = vsel %vm94, %v488, 0
    %491 = vmatpush.msra.mxu0 0.0
    %492 = vmatpush.msra.mxu0 0.0
    %493 = vmatpush.msra.mxu0 0.0
    %494 = vmatpush.msra.mxu0 0.0
    %495 = vmatpush.msra.mxu0 0.0
    %496 = vmatpush.msra.mxu0 0.0
    %497 = vmatpush.msra.mxu0 0.0
    %498 = vmatpush.msra.mxu0 0.0
    %499 = vmatpush.msra.mxu0 0.0
    %500 = vmatpush.msra.mxu0 0.0
    %501 = vmatpush.msra.mxu0 0.0
    %502 = vmatpush.msra.mxu0 0.0
    %503 = vmatpush.msra.mxu0 %v78
    %504 = vmatpush.msra.mxu0 %v77
    %505 = vmatpush.msra.mxu0 %v76
    %506 = vmatpush.msra.mxu0 %v75
    %507 = vmatmul.f32.gmra.mxu0 %v489
    %v508 = vpop.f32.mrf.mxu0
    %v509 = vadd.f32 %v89, %v508
    %510 = vdwg.mxu0
    %v511 = vadd.f32 %v484, %v509
    %v512 = vxor.u32 %v511, 2147483648
    %v513 = vmul.f32 %v512, 1.442695
    %v514 = vpow.pop %v513
    %v515 = vadd.f32 %v514, 1.0
    %v516 = vrcp.pop %v515
    %v517 = vmul.f32 %v515, %v516
    %v518 = vsub.f32 1.0, %v517
    %v519 = vmul.f32 %v516, %v518
    %v520 = vadd.f32 %v516, %v519
    %vm521 = vweird.f32 %v515
    %vm522 = vweird.f32 %v516
    %vm523 = vmor %vm521, %vm522
    %v524 = vsel %vm523, %v516, %v520
    %v525 = vand.u32 2147483647, %v515
    %vm526 = vcmp.eq.f32.partialorder %v525, 8.507059e+37
    %v527 = vand.u32 %v515, 2147483648
    %v528 = vor.u32 1.1754944e-38, %v527
    %v529 = vsel %vm526, %v528, %v524
    %v530 = vmul.f32 1.0, %v529
    %532 = vrot.lane.b32.xlu0 %v509, 64
    %v533 = vpop.permute.xlu0 %532
    %v535 = vmul.f32 %v530, %v533
    %537 = vrot.lane.b32.xlu0 %v535, 64
    %v538 = vpop.permute.xlu0 %537
    %v540 = vadd.f32 %v484, %v538
    %v541 = vtanh.pop %v540
    %v542 = vsub.f32 1.0, %v530
    %544 = vrot.lane.b32.xlu0 %v541, 96
    %v545 = vpop.permute.xlu0 %544
    %v547 = vmul.f32 %v542, %v545
    %v548 = vmul.f32 %v530, %v399
    %v549 = vadd.f32 %v547, %v548
    %s550 = scalar_lea.vmem %s0, 6
    %v551 = vld [vmem:[%s550] sm:$0x3]
    %552 = vmatpush.msra.mxu0 0.0
    %553 = vmatpush.msra.mxu0 0.0
    %554 = vmatpush.msra.mxu0 0.0
    %555 = vmatpush.msra.mxu0 0.0
    %556 = vmatpush.msra.mxu0 0.0
    %557 = vmatpush.msra.mxu0 0.0
    %558 = vmatpush.msra.mxu0 0.0
    %559 = vmatpush.msra.mxu0 0.0
    %560 = vmatpush.msra.mxu0 0.0
    %561 = vmatpush.msra.mxu0 0.0
    %562 = vmatpush.msra.mxu0 0.0
    %563 = vmatpush.msra.mxu0 0.0
    %564 = vmatpush.msra.mxu0 %v70
    %565 = vmatpush.msra.mxu0 %v69
    %566 = vmatpush.msra.mxu0 %v68
    %567 = vmatpush.msra.mxu0 %v67
    %568 = vmatmul.f32.gmra.mxu0 %v464
    %v569 = vpop.f32.mrf.mxu0
    %v570 = vadd.f32 %v81, %v569
    %571 = vdwg.mxu0
    %v572 = vadd.f32 %v551, %v570
    %v573 = vxor.u32 %v572, 2147483648
    %v574 = vmul.f32 %v573, 1.442695
    %v575 = vpow.pop %v574
    %v576 = vadd.f32 %v575, 1.0
    %v577 = vrcp.pop %v576
    %v578 = vmul.f32 %v576, %v577
    %v579 = vsub.f32 1.0, %v578
    %v580 = vmul.f32 %v577, %v579
    %v581 = vadd.f32 %v577, %v580
    %vm582 = vweird.f32 %v576
    %vm583 = vweird.f32 %v577
    %vm584 = vmor %vm582, %vm583
    %v585 = vsel %vm584, %v577, %v581
    %v586 = vand.u32 2147483647, %v576
    %vm587 = vcmp.eq.f32.partialorder %v586, 8.507059e+37
    %v588 = vand.u32 %v576, 2147483648
    %v589 = vor.u32 1.1754944e-38, %v588
    %v590 = vsel %vm587, %v589, %v585
    %v591 = vmul.f32 1.0, %v590
    %593 = vrot.lane.b32.xlu0 %v570, 64
    %v594 = vpop.permute.xlu0 %593
    %v596 = vmul.f32 %v591, %v594
    %598 = vrot.lane.b32.xlu0 %v596, 64
    %v599 = vpop.permute.xlu0 %598
    %v601 = vadd.f32 %v551, %v599
    %v602 = vtanh.pop %v601
    %v603 = vsub.f32 1.0, %v591
    %605 = vrot.lane.b32.xlu0 %v602, 96
    %v606 = vpop.permute.xlu0 %605
    %v608 = vmul.f32 %v603, %v606
    %v609 = vmul.f32 %v591, %v460
    %v610 = vadd.f32 %v608, %v609
    %612 = vrot.lane.b32.xlu0 %v610, 96
    %v613 = vpop.permute.xlu0 %612
    %v614 = vsel %vm94, %v613, 0
    %616 = vmatpush.msra.mxu0 0.0
    %617 = vmatpush.msra.mxu0 0.0
    %618 = vmatpush.msra.mxu0 0.0
    %619 = vmatpush.msra.mxu0 0.0
    %620 = vmatpush.msra.mxu0 0.0
    %621 = vmatpush.msra.mxu0 0.0
    %622 = vmatpush.msra.mxu0 0.0
    %623 = vmatpush.msra.mxu0 0.0
    %624 = vmatpush.msra.mxu0 0.0
    %625 = vmatpush.msra.mxu0 0.0
    %626 = vmatpush.msra.mxu0 0.0
    %627 = vmatpush.msra.mxu0 0.0
    %628 = vmatpush.msra.mxu0 %v74
    %629 = vmatpush.msra.mxu0 %v73
    %630 = vmatpush.msra.mxu0 %v72
    %631 = vmatpush.msra.mxu0 %v71
    %632 = vmatmul.f32.gmra.mxu0 %v614
    %v633 = vpop.f32.mrf.mxu0
    %v634 = vadd.f32 %v85, %v633
    %635 = vdwg.mxu0
    %637 = vrot.lane.b32.xlu0 %v549, 96
    %v638 = vpop.permute.xlu0 %637
    %v639 = vsel %vm94, %v638, 0
    %641 = vmatpush.msra.mxu0 0.0
    %642 = vmatpush.msra.mxu0 0.0
    %643 = vmatpush.msra.mxu0 0.0
    %644 = vmatpush.msra.mxu0 0.0
    %645 = vmatpush.msra.mxu0 0.0
    %646 = vmatpush.msra.mxu0 0.0
    %647 = vmatpush.msra.mxu0 0.0
    %648 = vmatpush.msra.mxu0 0.0
    %649 = vmatpush.msra.mxu0 0.0
    %650 = vmatpush.msra.mxu0 0.0
    %651 = vmatpush.msra.mxu0 0.0
    %652 = vmatpush.msra.mxu0 0.0
    %653 = vmatpush.msra.mxu0 %v78
    %654 = vmatpush.msra.mxu0 %v77
    %655 = vmatpush.msra.mxu0 %v76
    %656 = vmatpush.msra.mxu0 %v75
    %657 = vmatmul.f32.gmra.mxu0 %v639
    %v658 = vpop.f32.mrf.mxu0
    %v659 = vadd.f32 %v89, %v658
    %660 = vdwg.mxu0
    %v661 = vadd.f32 %v634, %v659
    %v662 = vxor.u32 %v661, 2147483648
    %v663 = vmul.f32 %v662, 1.442695
    %v664 = vpow.pop %v663
    %v665 = vadd.f32 %v664, 1.0
    %v666 = vrcp.pop %v665
    %v667 = vmul.f32 %v665, %v666
    %v668 = vsub.f32 1.0, %v667
    %v669 = vmul.f32 %v666, %v668
    %v670 = vadd.f32 %v666, %v669
    %vm671 = vweird.f32 %v665
    %vm672 = vweird.f32 %v666
    %vm673 = vmor %vm671, %vm672
    %v674 = vsel %vm673, %v666, %v670
    %v675 = vand.u32 2147483647, %v665
    %vm676 = vcmp.eq.f32.partialorder %v675, 8.507059e+37
    %v677 = vand.u32 %v665, 2147483648
    %v678 = vor.u32 1.1754944e-38, %v677
    %v679 = vsel %vm676, %v678, %v674
    %v680 = vmul.f32 1.0, %v679
    %682 = vrot.lane.b32.xlu0 %v659, 64
    %v683 = vpop.permute.xlu0 %682
    %v685 = vmul.f32 %v680, %v683
    %687 = vrot.lane.b32.xlu0 %v685, 64
    %v688 = vpop.permute.xlu0 %687
    %v690 = vadd.f32 %v634, %v688
    %v691 = vtanh.pop %v690
    %v692 = vsub.f32 1.0, %v680
    %694 = vrot.lane.b32.xlu0 %v691, 96
    %v695 = vpop.permute.xlu0 %694
    %v697 = vmul.f32 %v692, %v695
    %v698 = vmul.f32 %v680, %v549
    %v699 = vadd.f32 %v697, %v698
    %s700 = scalar_lea.vmem %s0, 8
    %v701 = vld [vmem:[%s700] sm:$0x3]
    %702 = vmatpush.msra.mxu0 0.0
    %703 = vmatpush.msra.mxu0 0.0
    %704 = vmatpush.msra.mxu0 0.0
    %705 = vmatpush.msra.mxu0 0.0
    %706 = vmatpush.msra.mxu0 0.0
    %707 = vmatpush.msra.mxu0 0.0
    %708 = vmatpush.msra.mxu0 0.0
    %709 = vmatpush.msra.mxu0 0.0
    %710 = vmatpush.msra.mxu0 0.0
    %711 = vmatpush.msra.mxu0 0.0
    %712 = vmatpush.msra.mxu0 0.0
    %713 = vmatpush.msra.mxu0 0.0
    %714 = vmatpush.msra.mxu0 %v70
    %715 = vmatpush.msra.mxu0 %v69
    %716 = vmatpush.msra.mxu0 %v68
    %717 = vmatpush.msra.mxu0 %v67
    %718 = vmatmul.f32.gmra.mxu0 %v614
    %v719 = vpop.f32.mrf.mxu0
    %v720 = vadd.f32 %v81, %v719
    %721 = vdwg.mxu0
    %v722 = vadd.f32 %v701, %v720
    %v723 = vxor.u32 %v722, 2147483648
    %v724 = vmul.f32 %v723, 1.442695
    %v725 = vpow.pop %v724
    %v726 = vadd.f32 %v725, 1.0
    %v727 = vrcp.pop %v726
    %v728 = vmul.f32 %v726, %v727
    %v729 = vsub.f32 1.0, %v728
    %v730 = vmul.f32 %v727, %v729
    %v731 = vadd.f32 %v727, %v730
    %vm732 = vweird.f32 %v726
    %vm733 = vweird.f32 %v727
    %vm734 = vmor %vm732, %vm733
    %v735 = vsel %vm734, %v727, %v731
    %v736 = vand.u32 2147483647, %v726
    %vm737 = vcmp.eq.f32.partialorder %v736, 8.507059e+37
    %v738 = vand.u32 %v726, 2147483648
    %v739 = vor.u32 1.1754944e-38, %v738
    %v740 = vsel %vm737, %v739, %v735
    %v741 = vmul.f32 1.0, %v740
    %743 = vrot.lane.b32.xlu0 %v720, 64
    %v744 = vpop.permute.xlu0 %743
    %v746 = vmul.f32 %v741, %v744
    %748 = vrot.lane.b32.xlu0 %v746, 64
    %v749 = vpop.permute.xlu0 %748
    %v751 = vadd.f32 %v701, %v749
    %v752 = vtanh.pop %v751
    %v753 = vsub.f32 1.0, %v741
    %755 = vrot.lane.b32.xlu0 %v752, 96
    %v756 = vpop.permute.xlu0 %755
    %v758 = vmul.f32 %v753, %v756
    %v759 = vmul.f32 %v741, %v610
    %v760 = vadd.f32 %v758, %v759
    %762 = vrot.lane.b32.xlu0 %v760, 96
    %v763 = vpop.permute.xlu0 %762
    %v764 = vsel %vm94, %v763, 0
    %766 = vmatpush.msra.mxu0 0.0
    %767 = vmatpush.msra.mxu0 0.0
    %768 = vmatpush.msra.mxu0 0.0
    %769 = vmatpush.msra.mxu0 0.0
    %770 = vmatpush.msra.mxu0 0.0
    %771 = vmatpush.msra.mxu0 0.0
    %772 = vmatpush.msra.mxu0 0.0
    %773 = vmatpush.msra.mxu0 0.0
    %774 = vmatpush.msra.mxu0 0.0
    %775 = vmatpush.msra.mxu0 0.0
    %776 = vmatpush.msra.mxu0 0.0
    %777 = vmatpush.msra.mxu0 0.0
    %778 = vmatpush.msra.mxu0 %v74
    %779 = vmatpush.msra.mxu0 %v73
    %780 = vmatpush.msra.mxu0 %v72
    %781 = vmatpush.msra.mxu0 %v71
    %782 = vmatmul.f32.gmra.mxu0 %v764
    %v783 = vpop.f32.mrf.mxu0
    %v784 = vadd.f32 %v85, %v783
    %785 = vdwg.mxu0
    %787 = vrot.lane.b32.xlu0 %v699, 96
    %v788 = vpop.permute.xlu0 %787
    %v789 = vsel %vm94, %v788, 0
    %791 = vmatpush.msra.mxu0 0.0
    %792 = vmatpush.msra.mxu0 0.0
    %793 = vmatpush.msra.mxu0 0.0
    %794 = vmatpush.msra.mxu0 0.0
    %795 = vmatpush.msra.mxu0 0.0
    %796 = vmatpush.msra.mxu0 0.0
    %797 = vmatpush.msra.mxu0 0.0
    %798 = vmatpush.msra.mxu0 0.0
    %799 = vmatpush.msra.mxu0 0.0
    %800 = vmatpush.msra.mxu0 0.0
    %801 = vmatpush.msra.mxu0 0.0
    %802 = vmatpush.msra.mxu0 0.0
    %803 = vmatpush.msra.mxu0 %v78
    %804 = vmatpush.msra.mxu0 %v77
    %805 = vmatpush.msra.mxu0 %v76
    %806 = vmatpush.msra.mxu0 %v75
    %807 = vmatmul.f32.gmra.mxu0 %v789
    %v808 = vpop.f32.mrf.mxu0
    %v809 = vadd.f32 %v89, %v808
    %810 = vdwg.mxu0
    %v811 = vadd.f32 %v784, %v809
    %v812 = vxor.u32 %v811, 2147483648
    %v813 = vmul.f32 %v812, 1.442695
    %v814 = vpow.pop %v813
    %v815 = vadd.f32 %v814, 1.0
    %v816 = vrcp.pop %v815
    %v817 = vmul.f32 %v815, %v816
    %v818 = vsub.f32 1.0, %v817
    %v819 = vmul.f32 %v816, %v818
    %v820 = vadd.f32 %v816, %v819
    %vm821 = vweird.f32 %v815
    %vm822 = vweird.f32 %v816
    %vm823 = vmor %vm821, %vm822
    %v824 = vsel %vm823, %v816, %v820
    %v825 = vand.u32 2147483647, %v815
    %vm826 = vcmp.eq.f32.partialorder %v825, 8.507059e+37
    %v827 = vand.u32 %v815, 2147483648
    %v828 = vor.u32 1.1754944e-38, %v827
    %v829 = vsel %vm826, %v828, %v824
    %v830 = vmul.f32 1.0, %v829
    %832 = vrot.lane.b32.xlu0 %v809, 64
    %v833 = vpop.permute.xlu0 %832
    %v835 = vmul.f32 %v830, %v833
    %837 = vrot.lane.b32.xlu0 %v835, 64
    %v838 = vpop.permute.xlu0 %837
    %v840 = vadd.f32 %v784, %v838
    %v841 = vtanh.pop %v840
    %v842 = vsub.f32 1.0, %v830
    %844 = vrot.lane.b32.xlu0 %v841, 96
    %v845 = vpop.permute.xlu0 %844
    %v847 = vmul.f32 %v842, %v845
    %v848 = vmul.f32 %v830, %v699
    %v849 = vadd.f32 %v847, %v848
    %s850 = scalar_lea.vmem %s0, 10
    %v851 = vld [vmem:[%s850] sm:$0x3]
    %852 = vmatpush.msra.mxu0 0.0
    %853 = vmatpush.msra.mxu0 0.0
    %854 = vmatpush.msra.mxu0 0.0
    %855 = vmatpush.msra.mxu0 0.0
    %856 = vmatpush.msra.mxu0 0.0
    %857 = vmatpush.msra.mxu0 0.0
    %858 = vmatpush.msra.mxu0 0.0
    %859 = vmatpush.msra.mxu0 0.0
    %860 = vmatpush.msra.mxu0 0.0
    %861 = vmatpush.msra.mxu0 0.0
    %862 = vmatpush.msra.mxu0 0.0
    %863 = vmatpush.msra.mxu0 0.0
    %864 = vmatpush.msra.mxu0 %v70
    %865 = vmatpush.msra.mxu0 %v69
    %866 = vmatpush.msra.mxu0 %v68
    %867 = vmatpush.msra.mxu0 %v67
    %868 = vmatmul.f32.gmra.mxu0 %v764
    %v869 = vpop.f32.mrf.mxu0
    %v870 = vadd.f32 %v81, %v869
    %871 = vdwg.mxu0
    %v872 = vadd.f32 %v851, %v870
    %v873 = vxor.u32 %v872, 2147483648
    %v874 = vmul.f32 %v873, 1.442695
    %v875 = vpow.pop %v874
    %v876 = vadd.f32 %v875, 1.0
    %v877 = vrcp.pop %v876
    %v878 = vmul.f32 %v876, %v877
    %v879 = vsub.f32 1.0, %v878
    %v880 = vmul.f32 %v877, %v879
    %v881 = vadd.f32 %v877, %v880
    %vm882 = vweird.f32 %v876
    %vm883 = vweird.f32 %v877
    %vm884 = vmor %vm882, %vm883
    %v885 = vsel %vm884, %v877, %v881
    %v886 = vand.u32 2147483647, %v876
    %vm887 = vcmp.eq.f32.partialorder %v886, 8.507059e+37
    %v888 = vand.u32 %v876, 2147483648
    %v889 = vor.u32 1.1754944e-38, %v888
    %v890 = vsel %vm887, %v889, %v885
    %v891 = vmul.f32 1.0, %v890
    %893 = vrot.lane.b32.xlu0 %v870, 64
    %v894 = vpop.permute.xlu0 %893
    %v896 = vmul.f32 %v891, %v894
    %898 = vrot.lane.b32.xlu0 %v896, 64
    %v899 = vpop.permute.xlu0 %898
    %v901 = vadd.f32 %v851, %v899
    %v902 = vtanh.pop %v901
    %v903 = vsub.f32 1.0, %v891
    %905 = vrot.lane.b32.xlu0 %v902, 96
    %v906 = vpop.permute.xlu0 %905
    %v908 = vmul.f32 %v903, %v906
    %v909 = vmul.f32 %v891, %v760
    %v910 = vadd.f32 %v908, %v909
    %912 = vrot.lane.b32.xlu0 %v910, 96
    %v913 = vpop.permute.xlu0 %912
    %v914 = vsel %vm94, %v913, 0
    %916 = vmatpush.msra.mxu0 0.0
    %917 = vmatpush.msra.mxu0 0.0
    %918 = vmatpush.msra.mxu0 0.0
    %919 = vmatpush.msra.mxu0 0.0
    %920 = vmatpush.msra.mxu0 0.0
    %921 = vmatpush.msra.mxu0 0.0
    %922 = vmatpush.msra.mxu0 0.0
    %923 = vmatpush.msra.mxu0 0.0
    %924 = vmatpush.msra.mxu0 0.0
    %925 = vmatpush.msra.mxu0 0.0
    %926 = vmatpush.msra.mxu0 0.0
    %927 = vmatpush.msra.mxu0 0.0
    %928 = vmatpush.msra.mxu0 %v74
    %929 = vmatpush.msra.mxu0 %v73
    %930 = vmatpush.msra.mxu0 %v72
    %931 = vmatpush.msra.mxu0 %v71
    %932 = vmatmul.f32.gmra.mxu0 %v914
    %v933 = vpop.f32.mrf.mxu0
    %v934 = vadd.f32 %v85, %v933
    %935 = vdwg.mxu0
    %937 = vrot.lane.b32.xlu0 %v849, 96
    %v938 = vpop.permute.xlu0 %937
    %v939 = vsel %vm94, %v938, 0
    %941 = vmatpush.msra.mxu0 0.0
    %942 = vmatpush.msra.mxu0 0.0
    %943 = vmatpush.msra.mxu0 0.0
    %944 = vmatpush.msra.mxu0 0.0
    %945 = vmatpush.msra.mxu0 0.0
    %946 = vmatpush.msra.mxu0 0.0
    %947 = vmatpush.msra.mxu0 0.0
    %948 = vmatpush.msra.mxu0 0.0
    %949 = vmatpush.msra.mxu0 0.0
    %950 = vmatpush.msra.mxu0 0.0
    %951 = vmatpush.msra.mxu0 0.0
    %952 = vmatpush.msra.mxu0 0.0
    %953 = vmatpush.msra.mxu0 %v78
    %954 = vmatpush.msra.mxu0 %v77
    %955 = vmatpush.msra.mxu0 %v76
    %956 = vmatpush.msra.mxu0 %v75
    %957 = vmatmul.f32.gmra.mxu0 %v939
    %v958 = vpop.f32.mrf.mxu0
    %v959 = vadd.f32 %v89, %v958
    %960 = vdwg.mxu0
    %v961 = vadd.f32 %v934, %v959
    %v962 = vxor.u32 %v961, 2147483648
    %v963 = vmul.f32 %v962, 1.442695
    %v964 = vpow.pop %v963
    %v965 = vadd.f32 %v964, 1.0
    %v966 = vrcp.pop %v965
    %v967 = vmul.f32 %v965, %v966
    %v968 = vsub.f32 1.0, %v967
    %v969 = vmul.f32 %v966, %v968
    %v970 = vadd.f32 %v966, %v969
    %vm971 = vweird.f32 %v965
    %vm972 = vweird.f32 %v966
    %vm973 = vmor %vm971, %vm972
    %v974 = vsel %vm973, %v966, %v970
    %v975 = vand.u32 2147483647, %v965
    %vm976 = vcmp.eq.f32.partialorder %v975, 8.507059e+37
    %v977 = vand.u32 %v965, 2147483648
    %v978 = vor.u32 1.1754944e-38, %v977
    %v979 = vsel %vm976, %v978, %v974
    %v980 = vmul.f32 1.0, %v979
    %982 = vrot.lane.b32.xlu0 %v959, 64
    %v983 = vpop.permute.xlu0 %982
    %v985 = vmul.f32 %v980, %v983
    %987 = vrot.lane.b32.xlu0 %v985, 64
    %v988 = vpop.permute.xlu0 %987
    %v990 = vadd.f32 %v934, %v988
    %v991 = vtanh.pop %v990
    %v992 = vsub.f32 1.0, %v980
    %994 = vrot.lane.b32.xlu0 %v991, 96
    %v995 = vpop.permute.xlu0 %994
    %v997 = vmul.f32 %v992, %v995
    %v998 = vmul.f32 %v980, %v849
    %v999 = vadd.f32 %v997, %v998
    %s1000 = scalar_lea.vmem %s0, 12
    %v1001 = vld [vmem:[%s1000] sm:$0x3]
    %1002 = vmatpush.msra.mxu0 0.0
    %1003 = vmatpush.msra.mxu0 0.0
    %1004 = vmatpush.msra.mxu0 0.0
    %1005 = vmatpush.msra.mxu0 0.0
    %1006 = vmatpush.msra.mxu0 0.0
    %1007 = vmatpush.msra.mxu0 0.0
    %1008 = vmatpush.msra.mxu0 0.0
    %1009 = vmatpush.msra.mxu0 0.0
    %1010 = vmatpush.msra.mxu0 0.0
    %1011 = vmatpush.msra.mxu0 0.0
    %1012 = vmatpush.msra.mxu0 0.0
    %1013 = vmatpush.msra.mxu0 0.0
    %1014 = vmatpush.msra.mxu0 %v70
    %1015 = vmatpush.msra.mxu0 %v69
    %1016 = vmatpush.msra.mxu0 %v68
    %1017 = vmatpush.msra.mxu0 %v67
    %1018 = vmatmul.f32.gmra.mxu0 %v914
    %v1019 = vpop.f32.mrf.mxu0
    %v1020 = vadd.f32 %v81, %v1019
    %1021 = vdwg.mxu0
    %v1022 = vadd.f32 %v1001, %v1020
    %v1023 = vxor.u32 %v1022, 2147483648
    %v1024 = vmul.f32 %v1023, 1.442695
    %v1025 = vpow.pop %v1024
    %v1026 = vadd.f32 %v1025, 1.0
    %v1027 = vrcp.pop %v1026
    %v1028 = vmul.f32 %v1026, %v1027
    %v1029 = vsub.f32 1.0, %v1028
    %v1030 = vmul.f32 %v1027, %v1029
    %v1031 = vadd.f32 %v1027, %v1030
    %vm1032 = vweird.f32 %v1026
    %vm1033 = vweird.f32 %v1027
    %vm1034 = vmor %vm1032, %vm1033
    %v1035 = vsel %vm1034, %v1027, %v1031
    %v1036 = vand.u32 2147483647, %v1026
    %vm1037 = vcmp.eq.f32.partialorder %v1036, 8.507059e+37
    %v1038 = vand.u32 %v1026, 2147483648
    %v1039 = vor.u32 1.1754944e-38, %v1038
    %v1040 = vsel %vm1037, %v1039, %v1035
    %v1041 = vmul.f32 1.0, %v1040
    %1043 = vrot.lane.b32.xlu0 %v1020, 64
    %v1044 = vpop.permute.xlu0 %1043
    %v1046 = vmul.f32 %v1041, %v1044
    %1048 = vrot.lane.b32.xlu0 %v1046, 64
    %v1049 = vpop.permute.xlu0 %1048
    %v1051 = vadd.f32 %v1001, %v1049
    %v1052 = vtanh.pop %v1051
    %v1053 = vsub.f32 1.0, %v1041
    %1055 = vrot.lane.b32.xlu0 %v1052, 96
    %v1056 = vpop.permute.xlu0 %1055
    %v1058 = vmul.f32 %v1053, %v1056
    %v1059 = vmul.f32 %v1041, %v910
    %v1060 = vadd.f32 %v1058, %v1059
    %1062 = vrot.lane.b32.xlu0 %v1060, 96
    %v1063 = vpop.permute.xlu0 %1062
    %v1064 = vsel %vm94, %v1063, 0
    %1066 = vmatpush.msra.mxu0 0.0
    %1067 = vmatpush.msra.mxu0 0.0
    %1068 = vmatpush.msra.mxu0 0.0
    %1069 = vmatpush.msra.mxu0 0.0
    %1070 = vmatpush.msra.mxu0 0.0
    %1071 = vmatpush.msra.mxu0 0.0
    %1072 = vmatpush.msra.mxu0 0.0
    %1073 = vmatpush.msra.mxu0 0.0
    %1074 = vmatpush.msra.mxu0 0.0
    %1075 = vmatpush.msra.mxu0 0.0
    %1076 = vmatpush.msra.mxu0 0.0
    %1077 = vmatpush.msra.mxu0 0.0
    %1078 = vmatpush.msra.mxu0 %v74
    %1079 = vmatpush.msra.mxu0 %v73
    %1080 = vmatpush.msra.mxu0 %v72
    %1081 = vmatpush.msra.mxu0 %v71
    %1082 = vmatmul.f32.gmra.mxu0 %v1064
    %v1083 = vpop.f32.mrf.mxu0
    %v1084 = vadd.f32 %v85, %v1083
    %1085 = vdwg.mxu0
    %1087 = vrot.lane.b32.xlu0 %v999, 96
    %v1088 = vpop.permute.xlu0 %1087
    %v1089 = vsel %vm94, %v1088, 0
    %1091 = vmatpush.msra.mxu0 0.0
    %1092 = vmatpush.msra.mxu0 0.0
    %1093 = vmatpush.msra.mxu0 0.0
    %1094 = vmatpush.msra.mxu0 0.0
    %1095 = vmatpush.msra.mxu0 0.0
    %1096 = vmatpush.msra.mxu0 0.0
    %1097 = vmatpush.msra.mxu0 0.0
    %1098 = vmatpush.msra.mxu0 0.0
    %1099 = vmatpush.msra.mxu0 0.0
    %1100 = vmatpush.msra.mxu0 0.0
    %1101 = vmatpush.msra.mxu0 0.0
    %1102 = vmatpush.msra.mxu0 0.0
    %1103 = vmatpush.msra.mxu0 %v78
    %1104 = vmatpush.msra.mxu0 %v77
    %1105 = vmatpush.msra.mxu0 %v76
    %1106 = vmatpush.msra.mxu0 %v75
    %1107 = vmatmul.f32.gmra.mxu0 %v1089
    %v1108 = vpop.f32.mrf.mxu0
    %v1109 = vadd.f32 %v89, %v1108
    %1110 = vdwg.mxu0
    %v1111 = vadd.f32 %v1084, %v1109
    %v1112 = vxor.u32 %v1111, 2147483648
    %v1113 = vmul.f32 %v1112, 1.442695
    %v1114 = vpow.pop %v1113
    %v1115 = vadd.f32 %v1114, 1.0
    %v1116 = vrcp.pop %v1115
    %v1117 = vmul.f32 %v1115, %v1116
    %v1118 = vsub.f32 1.0, %v1117
    %v1119 = vmul.f32 %v1116, %v1118
    %v1120 = vadd.f32 %v1116, %v1119
    %vm1121 = vweird.f32 %v1115
    %vm1122 = vweird.f32 %v1116
    %vm1123 = vmor %vm1121, %vm1122
    %v1124 = vsel %vm1123, %v1116, %v1120
    %v1125 = vand.u32 2147483647, %v1115
    %vm1126 = vcmp.eq.f32.partialorder %v1125, 8.507059e+37
    %v1127 = vand.u32 %v1115, 2147483648
    %v1128 = vor.u32 1.1754944e-38, %v1127
    %v1129 = vsel %vm1126, %v1128, %v1124
    %v1130 = vmul.f32 1.0, %v1129
    %1132 = vrot.lane.b32.xlu0 %v1109, 64
    %v1133 = vpop.permute.xlu0 %1132
    %v1135 = vmul.f32 %v1130, %v1133
    %1137 = vrot.lane.b32.xlu0 %v1135, 64
    %v1138 = vpop.permute.xlu0 %1137
    %v1140 = vadd.f32 %v1084, %v1138
    %v1141 = vtanh.pop %v1140
    %v1142 = vsub.f32 1.0, %v1130
    %1144 = vrot.lane.b32.xlu0 %v1141, 96
    %v1145 = vpop.permute.xlu0 %1144
    %v1147 = vmul.f32 %v1142, %v1145
    %v1148 = vmul.f32 %v1130, %v999
    %v1149 = vadd.f32 %v1147, %v1148
    %s1150 = scalar_lea.vmem %s0, 14
    %v1151 = vld [vmem:[%s1150] sm:$0x3]
    %1152 = vmatpush.msra.mxu0 0.0
    %1153 = vmatpush.msra.mxu0 0.0
    %1154 = vmatpush.msra.mxu0 0.0
    %1155 = vmatpush.msra.mxu0 0.0
    %1156 = vmatpush.msra.mxu0 0.0
    %1157 = vmatpush.msra.mxu0 0.0
    %1158 = vmatpush.msra.mxu0 0.0
    %1159 = vmatpush.msra.mxu0 0.0
    %1160 = vmatpush.msra.mxu0 0.0
    %1161 = vmatpush.msra.mxu0 0.0
    %1162 = vmatpush.msra.mxu0 0.0
    %1163 = vmatpush.msra.mxu0 0.0
    %1164 = vmatpush.msra.mxu0 %v70
    %1165 = vmatpush.msra.mxu0 %v69
    %1166 = vmatpush.msra.mxu0 %v68
    %1167 = vmatpush.msra.mxu0 %v67
    %1168 = vmatmul.f32.gmra.mxu0 %v1064
    %v1169 = vpop.f32.mrf.mxu0
    %v1170 = vadd.f32 %v81, %v1169
    %1171 = vdwg.mxu0
    %v1172 = vadd.f32 %v1151, %v1170
    %v1173 = vxor.u32 %v1172, 2147483648
    %v1174 = vmul.f32 %v1173, 1.442695
    %v1175 = vpow.pop %v1174
    %v1176 = vadd.f32 %v1175, 1.0
    %v1177 = vrcp.pop %v1176
    %v1178 = vmul.f32 %v1176, %v1177
    %v1179 = vsub.f32 1.0, %v1178
    %v1180 = vmul.f32 %v1177, %v1179
    %v1181 = vadd.f32 %v1177, %v1180
    %vm1182 = vweird.f32 %v1176
    %vm1183 = vweird.f32 %v1177
    %vm1184 = vmor %vm1182, %vm1183
    %v1185 = vsel %vm1184, %v1177, %v1181
    %v1186 = vand.u32 2147483647, %v1176
    %vm1187 = vcmp.eq.f32.partialorder %v1186, 8.507059e+37
    %v1188 = vand.u32 %v1176, 2147483648
    %v1189 = vor.u32 1.1754944e-38, %v1188
    %v1190 = vsel %vm1187, %v1189, %v1185
    %v1191 = vmul.f32 1.0, %v1190
    %1193 = vrot.lane.b32.xlu0 %v1170, 64
    %v1194 = vpop.permute.xlu0 %1193
    %v1196 = vmul.f32 %v1191, %v1194
    %1198 = vrot.lane.b32.xlu0 %v1196, 64
    %v1199 = vpop.permute.xlu0 %1198
    %v1201 = vadd.f32 %v1151, %v1199
    %v1202 = vtanh.pop %v1201
    %v1203 = vsub.f32 1.0, %v1191
    %1205 = vrot.lane.b32.xlu0 %v1202, 96
    %v1206 = vpop.permute.xlu0 %1205
    %v1208 = vmul.f32 %v1203, %v1206
    %v1209 = vmul.f32 %v1191, %v1060
    %v1210 = vadd.f32 %v1208, %v1209
    %1212 = vrot.lane.b32.xlu0 %v1210, 96
    %v1213 = vpop.permute.xlu0 %1212
    %v1214 = vsel %vm94, %v1213, 0
    %1216 = vmatpush.msra.mxu0 0.0
    %1217 = vmatpush.msra.mxu0 0.0
    %1218 = vmatpush.msra.mxu0 0.0
    %1219 = vmatpush.msra.mxu0 0.0
    %1220 = vmatpush.msra.mxu0 0.0
    %1221 = vmatpush.msra.mxu0 0.0
    %1222 = vmatpush.msra.mxu0 0.0
    %1223 = vmatpush.msra.mxu0 0.0
    %1224 = vmatpush.msra.mxu0 0.0
    %1225 = vmatpush.msra.mxu0 0.0
    %1226 = vmatpush.msra.mxu0 0.0
    %1227 = vmatpush.msra.mxu0 0.0
    %1228 = vmatpush.msra.mxu0 %v74
    %1229 = vmatpush.msra.mxu0 %v73
    %1230 = vmatpush.msra.mxu0 %v72
    %1231 = vmatpush.msra.mxu0 %v71
    %1232 = vmatmul.f32.gmra.mxu0 %v1214
    %v1233 = vpop.f32.mrf.mxu0
    %v1234 = vadd.f32 %v85, %v1233
    %1235 = vdwg.mxu0
    %1237 = vrot.lane.b32.xlu0 %v1149, 96
    %v1238 = vpop.permute.xlu0 %1237
    %v1239 = vsel %vm94, %v1238, 0
    %1241 = vmatpush.msra.mxu0 0.0
    %1242 = vmatpush.msra.mxu0 0.0
    %1243 = vmatpush.msra.mxu0 0.0
    %1244 = vmatpush.msra.mxu0 0.0
    %1245 = vmatpush.msra.mxu0 0.0
    %1246 = vmatpush.msra.mxu0 0.0
    %1247 = vmatpush.msra.mxu0 0.0
    %1248 = vmatpush.msra.mxu0 0.0
    %1249 = vmatpush.msra.mxu0 0.0
    %1250 = vmatpush.msra.mxu0 0.0
    %1251 = vmatpush.msra.mxu0 0.0
    %1252 = vmatpush.msra.mxu0 0.0
    %1253 = vmatpush.msra.mxu0 %v78
    %1254 = vmatpush.msra.mxu0 %v77
    %1255 = vmatpush.msra.mxu0 %v76
    %1256 = vmatpush.msra.mxu0 %v75
    %1257 = vmatmul.f32.gmra.mxu0 %v1239
    %v1258 = vpop.f32.mrf.mxu0
    %v1259 = vadd.f32 %v89, %v1258
    %1260 = vdwg.mxu0
    %v1261 = vadd.f32 %v1234, %v1259
    %v1262 = vxor.u32 %v1261, 2147483648
    %v1263 = vmul.f32 %v1262, 1.442695
    %v1264 = vpow.pop %v1263
    %v1265 = vadd.f32 %v1264, 1.0
    %v1266 = vrcp.pop %v1265
    %v1267 = vmul.f32 %v1265, %v1266
    %v1268 = vsub.f32 1.0, %v1267
    %v1269 = vmul.f32 %v1266, %v1268
    %v1270 = vadd.f32 %v1266, %v1269
    %vm1271 = vweird.f32 %v1265
    %vm1272 = vweird.f32 %v1266
    %vm1273 = vmor %vm1271, %vm1272
    %v1274 = vsel %vm1273, %v1266, %v1270
    %v1275 = vand.u32 2147483647, %v1265
    %vm1276 = vcmp.eq.f32.partialorder %v1275, 8.507059e+37
    %v1277 = vand.u32 %v1265, 2147483648
    %v1278 = vor.u32 1.1754944e-38, %v1277
    %v1279 = vsel %vm1276, %v1278, %v1274
    %v1280 = vmul.f32 1.0, %v1279
    %1282 = vrot.lane.b32.xlu0 %v1259, 64
    %v1283 = vpop.permute.xlu0 %1282
    %v1285 = vmul.f32 %v1280, %v1283
    %1287 = vrot.lane.b32.xlu0 %v1285, 64
    %v1288 = vpop.permute.xlu0 %1287
    %v1290 = vadd.f32 %v1234, %v1288
    %v1291 = vtanh.pop %v1290
    %v1292 = vsub.f32 1.0, %v1280
    %1294 = vrot.lane.b32.xlu0 %v1291, 96
    %v1295 = vpop.permute.xlu0 %1294
    %v1297 = vmul.f32 %v1292, %v1295
    %v1298 = vmul.f32 %v1280, %v1149
    %v1299 = vadd.f32 %v1297, %v1298
    %vm1301 = vcmask 254976
    %1302 = vst.msk [vmem:[#allocation2] sm:$0x3] %vm1301, %v1213
    %1304 = vrot.lane.b32.xlu0 %v1299, 96
    %v1305 = vpop.permute.xlu0 %1304
    %1307 = vst.msk [vmem:[#allocation3] sm:$0x3] %vm1301, %v1305
    %1308 = vst.msk [vmem:[%s7] sm:$0x3] %vm1301, %v1213
    %1309 = vst.msk [vmem:[%s8] sm:$0x3] %vm1301, %v1305
    // Predicated region
    $region42: #{multitask_gru_forward.1} parent=1 // pred_check
      _
    $region43: #{multitask_gru_forward.1} parent=1 // pred_check_branch
      %1311 = sbr.rel (0) target = $region45
    $region44: #{multitask_gru_forward.1} parent=1 // pred_region
      _
    $region45: #{multitask_gru_forward.1} parent=1 // pred_fallthru
      _
    // Predicated region
    $region46: #{multitask_gru_forward.1} parent=1 // pred_check
      _
    $region47: #{multitask_gru_forward.1} parent=1 // pred_check_branch
      %1313 = sbr.rel (0) target = $region49
    $region48: #{multitask_gru_forward.1} parent=1 // pred_region
      _
    $region49: #{multitask_gru_forward.1} parent=1 // pred_fallthru
      _
    // Predicated region
    $region50: #{multitask_gru_forward.1} parent=1 // pred_check
      _
    $region51: #{multitask_gru_forward.1} parent=1 // pred_check_branch
      %1315 = sbr.rel (0) target = $region53
    $region52: #{multitask_gru_forward.1} parent=1 // pred_region
      _
    $region53: #{multitask_gru_forward.1} parent=1 // pred_fallthru
      _
    // Predicated region
    $region54: #{multitask_gru_forward.1} parent=1 // pred_check
      _
    $region55: #{multitask_gru_forward.1} parent=1 // pred_check_branch
      %1317 = sbr.rel (0) target = $region57
    $region56: #{multitask_gru_forward.1} parent=1 // pred_region
      _
    $region57: #{multitask_gru_forward.1} parent=1 // pred_fallthru
      _
    %1318 = vsyncpa [#allocation5], 1
    %1319 = vsyncpa [#allocation7], 1

</llo_original>
